<compile_context>
chip_gen: v7x
topology: tpu7x:2x2x1
jax: 0.10.0
libtpu: 0.0.40
codegen_flags: <defaults>
</compile_context>

<pallas_src>
import functools

import jax
import jax.numpy as jnp
from jax.experimental import pallas as pl
from jax.experimental.pallas import tpu as pltpu

BN_EPS = 1e-5
LANE = 128


def _round_up(v, m):
    return ((v + m - 1) // m) * m


@functools.lru_cache(maxsize=None)
def _vmem_limit():
    """Generation-aware VMEM budget (~45% of physical, capped at 64 MiB)."""
    cap = 128 * 1024 * 1024
    try:
        get_info = getattr(pltpu, "get_tpu_info", None)
        if get_info is not None:
            cap = int(getattr(get_info(), "vmem_capacity_bytes", cap) or cap)
    except Exception:
        pass
    return int(min(cap * 0.45, 64 * 1024 * 1024))


def _cparams(sem):
    return pltpu.CompilerParams(dimension_semantics=sem,
                                vmem_limit_bytes=_vmem_limit())


def _partial8(v):
    """Place a (1, C) row vector in sublane 0 of an (8, C) block so that the
    per-tile partial-stat outputs stay (8, 128)-tile aligned."""
    c = v.shape[1]
    rows = jax.lax.broadcasted_iota(jnp.int32, (8, c), 0)
    return jnp.where(rows == 0, jnp.broadcast_to(v, (8, c)), 0.0)


# ----------------------------------------------------------------------------
# Kernel 1: pairwise squared distances (Gram form on the MXU), row+col tiled.
# ----------------------------------------------------------------------------
def _pdist_kernel(xi_ref, xt_ref, o_ref, *, n_valid, tile_c):
    j = pl.program_id(2)
    xi = xi_ref[...]                                            # (TN, D)
    xt = xt_ref[...]                                            # (D, TC)
    sq_i = jnp.sum(xi * xi, axis=1, keepdims=True)              # (TN, 1)
    sq_j = jnp.sum(xt * xt, axis=0, keepdims=True)              # (1, TC)
    gram = jnp.dot(xi, xt, preferred_element_type=jnp.float32)  # MXU
    d = jnp.maximum(sq_i + sq_j - 2.0 * gram, 0.0)              # clamp cancellation
    col = j * tile_c + jax.lax.broadcasted_iota(jnp.int32, d.shape, 1)
    o_ref[...] = jnp.where(col < n_valid, d, jnp.float32(1e30))


def pairwise_sqdist(x_pad, xt_pad, n_valid, tile_n, tile_c):
    B, Np, D = x_pad.shape
    grid = (B, Np // tile_n, Np // tile_c)
    return pl.pallas_call(
        functools.partial(_pdist_kernel, n_valid=n_valid, tile_c=tile_c),
        out_shape=jax.ShapeDtypeStruct((B, Np, Np), jnp.float32),
        grid=grid,
        in_specs=[
            pl.BlockSpec((None, tile_n, D), lambda b, i, j: (b, i, 0)),
            pl.BlockSpec((None, D, tile_c), lambda b, i, j: (b, 0, j)),
        ],
        out_specs=pl.BlockSpec((None, tile_n, tile_c), lambda b, i, j: (b, i, j)),
        compiler_params=_cparams(("parallel", "parallel", "parallel")),
    )(x_pad, xt_pad)


# ----------------------------------------------------------------------------
# Kernel 2: dual 1x1-conv matmul (center part P and neighbor part Q), bf16 out.
# ----------------------------------------------------------------------------
def _dual_matmul_kernel(x_ref, wp_ref, wq_ref, p_ref, q_ref):
    x = x_ref[...]
    p_ref[...] = jnp.dot(x, wp_ref[...],
                         preferred_element_type=jnp.float32).astype(p_ref.dtype)
    q_ref[...] = jnp.dot(x, wq_ref[...],
                         preferred_element_type=jnp.float32).astype(q_ref.dtype)


def dual_matmul(x, wp, wq, tile_m):
    Mp, Cin = x.shape
    Cp = wp.shape[1]
    return pl.pallas_call(
        _dual_matmul_kernel,
        out_shape=(jax.ShapeDtypeStruct((Mp, Cp), jnp.bfloat16),
                   jax.ShapeDtypeStruct((Mp, Cp), jnp.bfloat16)),
        grid=(Mp // tile_m,),
        in_specs=[pl.BlockSpec((tile_m, Cin), lambda i: (i, 0)),
                  pl.BlockSpec((Cin, Cp), lambda i: (0, 0)),
                  pl.BlockSpec((Cin, Cp), lambda i: (0, 0))],
        out_specs=(pl.BlockSpec((tile_m, Cp), lambda i: (i, 0)),
                   pl.BlockSpec((tile_m, Cp), lambda i: (i, 0))),
        compiler_params=_cparams(("parallel",)),
    )(x, wp, wq)


# ----------------------------------------------------------------------------
# Kernel 3: per-edge BN statistics (y = P_i + Q_{idx}), per-tile partial sums.
# Row-tile axis is parallel (distinct output rows); K axis accumulates.
# ----------------------------------------------------------------------------
def _edge_stats_kernel(p_ref, q_ref, s1_ref, s2_ref):
    k = pl.program_id(1)
    y = p_ref[...].astype(jnp.float32) + q_ref[...].astype(jnp.float32)
    s1 = _partial8(jnp.sum(y, axis=0, keepdims=True))
    s2 = _partial8(jnp.sum(y * y, axis=0, keepdims=True))

    @pl.when(k == 0)
    def _():
        s1_ref[...] = s1
        s2_ref[...] = s2

    @pl.when(k > 0)
    def _():
        s1_ref[...] += s1
        s2_ref[...] += s2


def edge_stats(p, qg, tile_p):
    K, Mp, Cp = qg.shape
    nt = Mp // tile_p
    return pl.pallas_call(
        _edge_stats_kernel,
        out_shape=(jax.ShapeDtypeStruct((nt, 8, Cp), jnp.float32),
                   jax.ShapeDtypeStruct((nt, 8, Cp), jnp.float32)),
        grid=(nt, K),
        in_specs=[pl.BlockSpec((tile_p, Cp), lambda i, k: (i, 0)),
                  pl.BlockSpec((None, tile_p, Cp), lambda i, k: (k, i, 0))],
        out_specs=(pl.BlockSpec((None, 8, Cp), lambda i, k: (i, 0, 0)),
                   pl.BlockSpec((None, 8, Cp), lambda i, k: (i, 0, 0))),
        compiler_params=_cparams(("parallel", "arbitrary")),
    )(p, qg)


# ----------------------------------------------------------------------------
# Kernel 4: folded BN + ReLU + running max over K neighbors (resident output).
# ----------------------------------------------------------------------------
def _edge_epilogue_kernel(p_ref, q_ref, scale_ref, shift_ref, o_ref):
    k = pl.program_id(1)
    y = p_ref[...].astype(jnp.float32) + q_ref[...].astype(jnp.float32)
    v = jnp.maximum(y * scale_ref[...] + shift_ref[...], 0.0).astype(o_ref.dtype)

    @pl.when(k == 0)
    def _():
        o_ref[...] = v

    @pl.when(k > 0)
    def _():
        o_ref[...] = jnp.maximum(o_ref[...], v)


def edge_epilogue(p, qg, scale, shift, tile_p, out_dtype):
    K, Mp, Cp = qg.shape
    return pl.pallas_call(
        _edge_epilogue_kernel,
        out_shape=jax.ShapeDtypeStruct((Mp, Cp), out_dtype),
        grid=(Mp // tile_p, K),
        in_specs=[pl.BlockSpec((tile_p, Cp), lambda i, k: (i, 0)),
                  pl.BlockSpec((None, tile_p, Cp), lambda i, k: (k, i, 0)),
                  pl.BlockSpec((1, Cp), lambda i, k: (0, 0)),
                  pl.BlockSpec((1, Cp), lambda i, k: (0, 0))],
        out_specs=pl.BlockSpec((tile_p, Cp), lambda i, k: (i, 0)),
        compiler_params=_cparams(("parallel", "arbitrary")),
    )(p, qg, scale, shift)


# ----------------------------------------------------------------------------
# Kernel 5: final point-wise conv matmul fused with per-tile partial BN stats.
# ----------------------------------------------------------------------------
def _matmul_stats_kernel(x_ref, w_ref, y_ref, s1_ref, s2_ref):
    y = jnp.dot(x_ref[...], w_ref[...], preferred_element_type=jnp.float32)
    y_ref[...] = y.astype(y_ref.dtype)
    s1_ref[...] = _partial8(jnp.sum(y, axis=0, keepdims=True))
    s2_ref[...] = _partial8(jnp.sum(y * y, axis=0, keepdims=True))


def matmul_stats(x, w, tile_m):
    Mp, Cin = x.shape
    Cp = w.shape[1]
    nt = Mp // tile_m
    return pl.pallas_call(
        _matmul_stats_kernel,
        out_shape=(jax.ShapeDtypeStruct((Mp, Cp), jnp.bfloat16),
                   jax.ShapeDtypeStruct((nt, 8, Cp), jnp.float32),
                   jax.ShapeDtypeStruct((nt, 8, Cp), jnp.float32)),
        grid=(nt,),
        in_specs=[pl.BlockSpec((tile_m, Cin), lambda i: (i, 0)),
                  pl.BlockSpec((Cin, Cp), lambda i: (0, 0))],
        out_specs=(pl.BlockSpec((tile_m, Cp), lambda i: (i, 0)),
                   pl.BlockSpec((None, 8, Cp), lambda i: (i, 0, 0)),
                   pl.BlockSpec((None, 8, Cp), lambda i: (i, 0, 0))),
        compiler_params=_cparams(("parallel",)),
    )(x, w)


# ----------------------------------------------------------------------------
# Kernel 6: final layer folded BN + ReLU (no neighbor max).
# ----------------------------------------------------------------------------
def _point_epilogue_kernel(y_ref, scale_ref, shift_ref, o_ref):
    y = y_ref[...].astype(jnp.float32)
    o_ref[...] = jnp.maximum(y * scale_ref[...] + shift_ref[...],
                             0.0).astype(o_ref.dtype)


def point_epilogue(y, scale, shift, tile_m, out_dtype):
    Mp, Cp = y.shape
    return pl.pallas_call(
        _point_epilogue_kernel,
        out_shape=jax.ShapeDtypeStruct((Mp, Cp), out_dtype),
        grid=(Mp // tile_m,),
        in_specs=[pl.BlockSpec((tile_m, Cp), lambda i: (i, 0)),
                  pl.BlockSpec((1, Cp), lambda i: (0, 0)),
                  pl.BlockSpec((1, Cp), lambda i: (0, 0))],
        out_specs=pl.BlockSpec((tile_m, Cp), lambda i: (i, 0)),
        compiler_params=_cparams(("parallel",)),
    )(y, scale, shift)


# ----------------------------------------------------------------------------
# JAX glue (padding / gather / tiny per-channel math only)
# ----------------------------------------------------------------------------
def _pad_cols(a, cp, dtype):
    rows, cols = a.shape
    return jnp.zeros((rows, cp), dtype).at[:, :cols].set(a.astype(dtype))


def _pad_rows(a, rows_to):
    pad = rows_to - a.shape[-2]
    if pad == 0:
        return a
    cfg = [(0, 0)] * a.ndim
    cfg[-2] = (0, pad)
    return jnp.pad(a, cfg)


def _fold_bn(s1p, s2p, count, gamma_p, beta_p):
    s1 = jnp.sum(s1p, axis=(0, 1))[None, :]                     # (1, Cp)
    s2 = jnp.sum(s2p, axis=(0, 1))[None, :]
    mean = s1 / count
    var = jnp.maximum(s2 / count - mean * mean, 0.0)             # biased (torch BN)
    scale = gamma_p * jax.lax.rsqrt(var + BN_EPS)
    shift = beta_p - mean * scale
    return scale, shift


def _edge_conv_layer(x_bnc, idx_kbn, p, m_pad, tile_p):
    """EdgeConv: 1x1 conv on [x_j - x_i, x_i] + train-mode BN + ReLU + max_k.

    Linearity: y_{k,i} = x_i @ (W_bot - W_top) + x_{idx[k,i]} @ W_top."""
    B, N, Cf = x_bnc.shape
    K = idx_kbn.shape[0]
    M = B * N
    w = p["w"]                                                   # (2*Cf, Cout)
    cout = w.shape[1]
    cp = _round_up(cout, LANE)
    wq = _pad_cols(w[:Cf], cp, jnp.bfloat16)                     # neighbor part
    wp = _pad_cols(w[Cf:] - w[:Cf], cp, jnp.bfloat16)            # center part
    g_p = _pad_cols(p["gamma"], cp, jnp.float32)
    b_p = _pad_cols(p["beta"], cp, jnp.float32)

    x_flat = _pad_rows(x_bnc.reshape(M, Cf).astype(jnp.bfloat16), m_pad)
    P, Q = dual_matmul(x_flat, wp, wq, tile_p)                   # (m_pad, cp) bf16

    # TODO(synk): the neighbor gather of Q still runs in XLA and round-trips a
    # (K, M, Cp) bf16 tensor through HBM; an in-kernel gather (scalar-prefetched
    # idx + DMA from a VMEM-resident per-batch Q) would remove it.
    bidx = jnp.arange(B)[None, :, None]                          # (1, B, 1)
    qg = Q[:M].reshape(B, N, cp)[bidx, idx_kbn]                  # (K, B, N, cp)
    qg = _pad_rows(qg.reshape(K, M, cp), m_pad)                  # (K, m_pad, cp)

    s1p, s2p = edge_stats(P, qg, tile_p)
    scale, shift = _fold_bn(s1p, s2p, float(K * M), g_p, b_p)
    out = edge_epilogue(P, qg, scale, shift, tile_p, jnp.bfloat16)
    return out[:M, :cout].reshape(B, N, cout)


def _point_conv_layer(x_bnc, p, m_pad, tile_p, out_dtype):
    """Plain 1x1 conv + train-mode BN + ReLU (final layer, no neighbors)."""
    B, N, Cf = x_bnc.shape
    M = B * N
    cout = p["w"].shape[1]
    cp = _round_up(cout, LANE)
    w_p = _pad_cols(p["w"], cp, jnp.bfloat16)
    g_p = _pad_cols(p["gamma"], cp, jnp.float32)
    b_p = _pad_cols(p["beta"], cp, jnp.float32)

    x_flat = _pad_rows(x_bnc.reshape(M, Cf).astype(jnp.bfloat16), m_pad)
    y, s1p, s2p = matmul_stats(x_flat, w_p, tile_p)
    scale, shift = _fold_bn(s1p, s2p, float(M), g_p, b_p)
    out = point_epilogue(y, scale, shift, tile_p, out_dtype)
    return out[:M, :cout].reshape(B, N, cout)


def init_params(key, in_features_dim, nn_depth, bb_size, latent_dim):
    params = []
    in_feat = in_features_dim * 2
    for i in range(nn_depth):
        cin = in_feat if i == 0 else bb_size * 2 ** (i + 1) * 2
        cout = bb_size * 4 if i == 0 else cin
        key, k1, k2, k3 = jax.random.split(key, 4)
        params.append(dict(
            w=0.1 * jax.random.normal(k1, (cin, cout), jnp.float32),
            gamma=1.0 + 0.1 * jax.random.normal(k2, (1, cout), jnp.float32),
            beta=0.1 * jax.random.normal(k3, (1, cout), jnp.float32),
        ))
    last_in = bb_size * 2 * sum(2 ** i for i in range(1, nn_depth + 1))
    key, k1, k2, k3 = jax.random.split(key, 4)
    params.append(dict(
        w=0.1 * jax.random.normal(k1, (last_in, latent_dim), jnp.float32),
        gamma=1.0 + 0.1 * jax.random.normal(k2, (1, latent_dim), jnp.float32),
        beta=0.1 * jax.random.normal(k3, (1, latent_dim), jnp.float32),
    ))
    return params


def dgcnn_forward(params, x, num_neighs):
    """x: (B, D, N) as in the PyTorch module. Returns (B, N, latent_dim)."""
    B, D, N = x.shape
    K = num_neighs
    x_bnc = jnp.transpose(x, (0, 2, 1)).astype(jnp.float32)      # (B, N, D)
    M = B * N
    tile_p = min(512, _round_up(M, 8))
    m_pad = _round_up(M, tile_p)

    # ---- kNN (self included, like torch_cluster.knn(x, x, k) per batch) ----
    n_pad = _round_up(N, LANE)
    tile_n = next(t for t in (512, 256, 128) if n_pad % t == 0)
    tile_c = next(t for t in (1024, 512, 256, 128) if n_pad % t == 0)
    x_p = jnp.pad(x_bnc, ((0, 0), (0, n_pad - N), (0, 0)))
    xt_p = jnp.transpose(x_p, (0, 2, 1))                         # (B, D, n_pad), tiny
    dist = pairwise_sqdist(x_p, xt_p, n_valid=N, tile_n=tile_n, tile_c=tile_c)
    # TODO(synk): k-smallest selection stays in XLA (lax.top_k); a streaming
    # in-kernel top-K (column-tiled running K-min in VMEM) would avoid the
    # O(N^2) HBM round trip of the distance matrix.
    _, idx = jax.lax.top_k(-dist[:, :N, :], K)                   # (B, N, K)
    idx_kbn = jnp.transpose(idx, (2, 0, 1))                      # (K, B, N), tiny

    outs = []
    cur = x_bnc
    for p in params[:-1]:
        cur = _edge_conv_layer(cur, idx_kbn, p, m_pad, tile_p)   # (B, N, Cout) bf16
        outs.append(cur)

    cat = jnp.concatenate(outs, axis=-1)                         # (B, N, last_in)
    out = _point_conv_layer(cat, params[-1], m_pad, tile_p, jnp.float32)
    return out                                                   # == features.transpose(1,2)


if __name__ == "__main__":
    # module hyper-params: num_neighs=4, in_features_dim=3, nn_depth=2,
    # bb_size=4, latent_dim=32; data: B=2 clouds of N=16 points.
    num_neighs, in_dim, depth, bb, latent = 4, 3, 2, 4, 32
    B, N = 2, 16

    key = jax.random.PRNGKey(0)
    kx, kp = jax.random.split(key)
    x = jax.random.normal(kx, (B, in_dim, N), jnp.float32)
    params = init_params(kp, in_dim, depth, bb, latent)

    fwd = jax.jit(dgcnn_forward, static_argnames=("num_neighs",))
    out = fwd(params, x, num_neighs=num_neighs)
    jax.block_until_ready(out)
    assert out.shape == (B, N, latent), out.shape
    print("KERNEL_OK")
</pallas_src>

<mosaic_0001>
module attributes {stable_mosaic.version = 11 : i64} {
  func.func @_dual_matmul_kernel(%arg0: i32, %arg1: memref<32x3xbf16, #tpu.memory_space<vmem>>, %arg2: memref<3x128xbf16, #tpu.memory_space<vmem>>, %arg3: memref<3x128xbf16, #tpu.memory_space<vmem>>, %arg4: memref<32x128xbf16, #tpu.memory_space<vmem>>, %arg5: memref<32x128xbf16, #tpu.memory_space<vmem>>) attributes {dimension_semantics = [#tpu.dimension_semantics<parallel>], iteration_bounds = array<i64: 1>, scalar_prefetch = 0 : i64, scratch_operands = 0 : i64, tpu.core_type = #tpu.core_type<tc>, window_params = [{transform_indices = @transform_0, window_bounds = array<i64: 32, 3>}, {pipeline_mode = #tpu.pipeline_mode<synchronous>, transform_indices = @transform_1, window_bounds = array<i64: 3, 128>}, {pipeline_mode = #tpu.pipeline_mode<synchronous>, transform_indices = @transform_2, window_bounds = array<i64: 3, 128>}, {transform_indices = @transform_3, window_bounds = array<i64: 32, 128>}, {transform_indices = @transform_4, window_bounds = array<i64: 32, 128>}]} {
    %c0 = arith.constant 0 : index
    %c0_0 = arith.constant 0 : index
    %0 = vector.load %arg1[%c0, %c0_0] : memref<32x3xbf16, #tpu.memory_space<vmem>>, vector<32x3xbf16>
    %c0_1 = arith.constant 0 : index
    %c0_2 = arith.constant 0 : index
    %1 = vector.load %arg2[%c0_1, %c0_2] : memref<3x128xbf16, #tpu.memory_space<vmem>>, vector<3x128xbf16>
    %cst = arith.constant dense<0.000000e+00> : vector<32x128xf32>
    %2 = tpu.matmul %0, %1, %cst {dimension_numbers = #tpu.dot_dimension_numbers<[1], [0], [0], [1], [0, 0, 1, 1], [], []>} : vector<32x3xbf16>, vector<3x128xbf16>, vector<32x128xf32> -> vector<32x128xf32>
    %3 = arith.truncf %2 : vector<32x128xf32> to vector<32x128xbf16>
    %c0_3 = arith.constant 0 : index
    %c0_4 = arith.constant 0 : index
    %4 = vector.load %arg4[%c0_3, %c0_4] : memref<32x128xbf16, #tpu.memory_space<vmem>>, vector<32x128xbf16>
    tpu.vector_store %arg4[%c0_3, %c0_4], %3 {strides = array<i32>} : memref<32x128xbf16, #tpu.memory_space<vmem>>, vector<32x128xbf16>,
    %c0_5 = arith.constant 0 : index
    %c0_6 = arith.constant 0 : index
    %5 = vector.load %arg3[%c0_5, %c0_6] : memref<3x128xbf16, #tpu.memory_space<vmem>>, vector<3x128xbf16>
    %cst_7 = arith.constant dense<0.000000e+00> : vector<32x128xf32>
    %6 = tpu.matmul %0, %5, %cst_7 {dimension_numbers = #tpu.dot_dimension_numbers<[1], [0], [0], [1], [0, 0, 1, 1], [], []>} : vector<32x3xbf16>, vector<3x128xbf16>, vector<32x128xf32> -> vector<32x128xf32>
    %7 = arith.truncf %6 : vector<32x128xf32> to vector<32x128xbf16>
    %c0_8 = arith.constant 0 : index
    %c0_9 = arith.constant 0 : index
    %8 = vector.load %arg5[%c0_8, %c0_9] : memref<32x128xbf16, #tpu.memory_space<vmem>>, vector<32x128xbf16>
    tpu.vector_store %arg5[%c0_8, %c0_9], %7 {strides = array<i32>} : memref<32x128xbf16, #tpu.memory_space<vmem>>, vector<32x128xbf16>,
    return
  }
  func.func @transform_0(%arg0: i32) -> (i32, i32) {
    %c0_i32 = arith.constant 0 : i32
    %c0_i32_0 = arith.constant 0 : i32
    return %arg0, %c0_i32 : i32, i32
  }
  func.func @transform_1(%arg0: i32) -> (i32, i32) {
    %c0_i32 = arith.constant 0 : i32
    %c0_i32_0 = arith.constant 0 : i32
    %c0_i32_1 = arith.constant 0 : i32
    return %c0_i32, %c0_i32_0 : i32, i32
  }
  func.func @transform_2(%arg0: i32) -> (i32, i32) {
    %c0_i32 = arith.constant 0 : i32
    %c0_i32_0 = arith.constant 0 : i32
    %c0_i32_1 = arith.constant 0 : i32
    return %c0_i32, %c0_i32_0 : i32, i32
  }
  func.func @transform_3(%arg0: i32) -> (i32, i32) {
    %c0_i32 = arith.constant 0 : i32
    %c0_i32_0 = arith.constant 0 : i32
    return %arg0, %c0_i32 : i32, i32
  }
  func.func @transform_4(%arg0: i32) -> (i32, i32) {
    %c0_i32 = arith.constant 0 : i32
    %c0_i32_0 = arith.constant 0 : i32
    return %arg0, %c0_i32 : i32, i32
  }
}

module attributes {stable_mosaic.version = 11 : i64} {
  func.func @_pdist_kernel(%arg0: i32, %arg1: i32, %arg2: i32, %arg3: memref<1x128x3xf32, #tpu.memory_space<vmem>>, %arg4: memref<1x3x128xf32, #tpu.memory_space<vmem>>, %arg5: memref<1x128x128xf32, #tpu.memory_space<vmem>>) attributes {dimension_semantics = [#tpu.dimension_semantics<parallel>, #tpu.dimension_semantics<parallel>, #tpu.dimension_semantics<parallel>], iteration_bounds = array<i64: 2, 1, 1>, scalar_prefetch = 0 : i64, scratch_operands = 0 : i64, tpu.core_type = #tpu.core_type<tc>, window_params = [{transform_indices = @transform_0, window_bounds = array<i64: 1, 128, 3>}, {transform_indices = @transform_1, window_bounds = array<i64: 1, 3, 128>}, {transform_indices = @transform_2, window_bounds = array<i64: 1, 128, 128>}]} {
    %c0 = arith.constant 0 : index
    %c0_0 = arith.constant 0 : index
    %c0_1 = arith.constant 0 : index
    %0 = vector.load %arg3[%c0, %c0_0, %c0_1] : memref<1x128x3xf32, #tpu.memory_space<vmem>>, vector<1x128x3xf32>
    %1 = vector.shape_cast %0 : vector<1x128x3xf32> to vector<128x3xf32>
    %c0_2 = arith.constant 0 : index
    %c0_3 = arith.constant 0 : index
    %c0_4 = arith.constant 0 : index
    %2 = vector.load %arg4[%c0_2, %c0_3, %c0_4] : memref<1x3x128xf32, #tpu.memory_space<vmem>>, vector<1x3x128xf32>
    %3 = vector.shape_cast %2 : vector<1x3x128xf32> to vector<3x128xf32>
    %4 = arith.mulf %1, %1 : vector<128x3xf32>
    %cst = arith.constant dense<0.000000e+00> : vector<128xf32>
    %5 = vector.multi_reduction <add>, %4, %cst [1] : vector<128x3xf32> to vector<128xf32>
    %6 = vector.shape_cast %5 : vector<128xf32> to vector<128x1xf32>
    %7 = arith.mulf %3, %3 : vector<3x128xf32>
    %cst_5 = arith.constant dense<0.000000e+00> : vector<128xf32>
    %8 = vector.multi_reduction <add>, %7, %cst_5 [0] : vector<3x128xf32> to vector<128xf32>
    %9 = vector.shape_cast %8 : vector<128xf32> to vector<1x128xf32>
    %cst_6 = arith.constant dense<0.000000e+00> : vector<128x128xf32>
    %10 = tpu.matmul %1, %3, %cst_6 {dimension_numbers = #tpu.dot_dimension_numbers<[1], [0], [0], [1], [0, 0, 1, 1], [], []>} : vector<128x3xf32>, vector<3x128xf32>, vector<128x128xf32> -> vector<128x128xf32>
    %11 = vector.broadcast %6 : vector<128x1xf32> to vector<128x128xf32>
    %12 = vector.broadcast %9 : vector<1x128xf32> to vector<128x128xf32>
    %13 = arith.addf %11, %12 : vector<128x128xf32>
    %cst_7 = arith.constant 2.000000e+00 : f32
    %14 = vector.broadcast %cst_7 : f32 to vector<128x128xf32>
    %15 = arith.mulf %14, %10 : vector<128x128xf32>
    %16 = arith.subf %13, %15 : vector<128x128xf32>
    %cst_8 = arith.constant 0.000000e+00 : f32
    %17 = vector.broadcast %cst_8 : f32 to vector<128x128xf32>
    %18 = arith.maximumf %16, %17 : vector<128x128xf32>
    %c128_i32 = arith.constant 128 : i32
    %19 = arith.muli %arg2, %c128_i32 : i32
    %20 = tpu.iota {dimensions = array<i32: 1>} : vector<128x128xi32>
    %21 = vector.broadcast %19 : i32 to vector<128x128xi32>
    %22 = arith.addi %21, %20 : vector<128x128xi32>
    %c16_i32 = arith.constant 16 : i32
    %23 = vector.broadcast %c16_i32 : i32 to vector<128x128xi32>
    %24 = arith.cmpi slt, %22, %23 : vector<128x128xi32>
    %cst_9 = arith.constant 1.000000e+30 : f32
    %25 = vector.broadcast %cst_9 : f32 to vector<128x128xf32>
    %26 = arith.select %24, %18, %25 : vector<128x128xi1>, vector<128x128xf32>
    %c0_10 = arith.constant 0 : index
    %c0_11 = arith.constant 0 : index
    %c0_12 = arith.constant 0 : index
    %27 = vector.load %arg5[%c0_10, %c0_11, %c0_12] : memref<1x128x128xf32, #tpu.memory_space<vmem>>, vector<1x128x128xf32>
    %28 = vector.shape_cast %27 : vector<1x128x128xf32> to vector<128x128xf32>
    %29 = vector.shape_cast %26 : vector<128x128xf32> to vector<1x128x128xf32>
    tpu.vector_store %arg5[%c0_10, %c0_11, %c0_12], %29 {strides = array<i32>} : memref<1x128x128xf32, #tpu.memory_space<vmem>>, vector<1x128x128xf32>,
    return
  }
  func.func @transform_0(%arg0: i32, %arg1: i32, %arg2: i32) -> (i32, i32, i32) {
    %c0_i32 = arith.constant 0 : i32
    %c0_i32_0 = arith.constant 0 : i32
    return %arg0, %arg1, %c0_i32 : i32, i32, i32
  }
  func.func @transform_1(%arg0: i32, %arg1: i32, %arg2: i32) -> (i32, i32, i32) {
    %c0_i32 = arith.constant 0 : i32
    %c0_i32_0 = arith.constant 0 : i32
    return %arg0, %c0_i32, %arg2 : i32, i32, i32
  }
  func.func @transform_2(%arg0: i32, %arg1: i32, %arg2: i32) -> (i32, i32, i32) {
    %c0_i32 = arith.constant 0 : i32
    return %arg0, %arg1, %arg2 : i32, i32, i32
  }
}

module attributes {stable_mosaic.version = 11 : i64} {
  func.func @_edge_stats_kernel(%arg0: i32, %arg1: i32, %arg2: memref<32x128xbf16, #tpu.memory_space<vmem>>, %arg3: memref<1x32x128xbf16, #tpu.memory_space<vmem>>, %arg4: memref<1x8x128xf32, #tpu.memory_space<vmem>>, %arg5: memref<1x8x128xf32, #tpu.memory_space<vmem>>) attributes {dimension_semantics = [#tpu.dimension_semantics<parallel>, #tpu.dimension_semantics<arbitrary>], iteration_bounds = array<i64: 1, 4>, scalar_prefetch = 0 : i64, scratch_operands = 0 : i64, tpu.core_type = #tpu.core_type<tc>, window_params = [{transform_indices = @transform_0, window_bounds = array<i64: 32, 128>}, {transform_indices = @transform_1, window_bounds = array<i64: 1, 32, 128>}, {transform_indices = @transform_2, window_bounds = array<i64: 1, 8, 128>}, {transform_indices = @transform_3, window_bounds = array<i64: 1, 8, 128>}]} {
    %c0 = arith.constant 0 : index
    %c0_0 = arith.constant 0 : index
    %0 = vector.load %arg2[%c0, %c0_0] : memref<32x128xbf16, #tpu.memory_space<vmem>>, vector<32x128xbf16>
    %1 = arith.extf %0 : vector<32x128xbf16> to vector<32x128xf32>
    %c0_1 = arith.constant 0 : index
    %c0_2 = arith.constant 0 : index
    %c0_3 = arith.constant 0 : index
    %2 = vector.load %arg3[%c0_1, %c0_2, %c0_3] : memref<1x32x128xbf16, #tpu.memory_space<vmem>>, vector<1x32x128xbf16>
    %3 = vector.shape_cast %2 : vector<1x32x128xbf16> to vector<32x128xbf16>
    %4 = arith.extf %3 : vector<32x128xbf16> to vector<32x128xf32>
    %5 = arith.addf %1, %4 : vector<32x128xf32>
    %cst = arith.constant dense<0.000000e+00> : vector<128xf32>
    %6 = vector.multi_reduction <add>, %5, %cst [0] : vector<32x128xf32> to vector<128xf32>
    %7 = vector.shape_cast %6 : vector<128xf32> to vector<1x128xf32>
    %8 = tpu.iota {dimensions = array<i32: 0>} : vector<8x128xi32>
    %c0_i32 = arith.constant 0 : i32
    %9 = vector.broadcast %c0_i32 : i32 to vector<8x128xi32>
    %10 = arith.cmpi eq, %8, %9 : vector<8x128xi32>
    %11 = vector.shape_cast %7 : vector<1x128xf32> to vector<1x128xf32>
    %12 = vector.broadcast %11 : vector<1x128xf32> to vector<8x128xf32>
    %cst_4 = arith.constant 0.000000e+00 : f32
    %13 = vector.broadcast %cst_4 : f32 to vector<8x128xf32>
    %14 = arith.select %10, %12, %13 : vector<8x128xi1>, vector<8x128xf32>
    %15 = arith.mulf %5, %5 : vector<32x128xf32>
    %cst_5 = arith.constant dense<0.000000e+00> : vector<128xf32>
    %16 = vector.multi_reduction <add>, %15, %cst_5 [0] : vector<32x128xf32> to vector<128xf32>
    %17 = vector.shape_cast %16 : vector<128xf32> to vector<1x128xf32>
    %18 = tpu.iota {dimensions = array<i32: 0>} : vector<8x128xi32>
    %c0_i32_6 = arith.constant 0 : i32
    %19 = vector.broadcast %c0_i32_6 : i32 to vector<8x128xi32>
    %20 = arith.cmpi eq, %18, %19 : vector<8x128xi32>
    %21 = vector.shape_cast %17 : vector<1x128xf32> to vector<1x128xf32>
    %22 = vector.broadcast %21 : vector<1x128xf32> to vector<8x128xf32>
    %cst_7 = arith.constant 0.000000e+00 : f32
    %23 = vector.broadcast %cst_7 : f32 to vector<8x128xf32>
    %24 = arith.select %20, %22, %23 : vector<8x128xi1>, vector<8x128xf32>
    %c0_i32_8 = arith.constant 0 : i32
    %25 = arith.cmpi eq, %arg1, %c0_i32_8 : i32
    %26 = arith.extui %25 : i1 to i32
    %c0_i32_9 = arith.constant 0 : i32
    %27 = arith.cmpi ne, %26, %c0_i32_9 : i32
    scf.if %27 {
      %c0_12 = arith.constant 0 : index
      %c0_13 = arith.constant 0 : index
      %c0_14 = arith.constant 0 : index
      %31 = vector.load %arg4[%c0_12, %c0_13, %c0_14] : memref<1x8x128xf32, #tpu.memory_space<vmem>>, vector<1x8x128xf32>
      %32 = vector.shape_cast %31 : vector<1x8x128xf32> to vector<8x128xf32>
      %33 = vector.shape_cast %14 : vector<8x128xf32> to vector<1x8x128xf32>
      tpu.vector_store %arg4[%c0_12, %c0_13, %c0_14], %33 {strides = array<i32>} : memref<1x8x128xf32, #tpu.memory_space<vmem>>, vector<1x8x128xf32>,
      %c0_15 = arith.constant 0 : index
      %c0_16 = arith.constant 0 : index
      %c0_17 = arith.constant 0 : index
      %34 = vector.load %arg5[%c0_15, %c0_16, %c0_17] : memref<1x8x128xf32, #tpu.memory_space<vmem>>, vector<1x8x128xf32>
      %35 = vector.shape_cast %34 : vector<1x8x128xf32> to vector<8x128xf32>
      %36 = vector.shape_cast %24 : vector<8x128xf32> to vector<1x8x128xf32>
      tpu.vector_store %arg5[%c0_15, %c0_16, %c0_17], %36 {strides = array<i32>} : memref<1x8x128xf32, #tpu.memory_space<vmem>>, vector<1x8x128xf32>,
    } else {
    }
    %c0_i32_10 = arith.constant 0 : i32
    %28 = arith.cmpi sgt, %arg1, %c0_i32_10 : i32
    %29 = arith.extui %28 : i1 to i32
    %c0_i32_11 = arith.constant 0 : i32
    %30 = arith.cmpi ne, %29, %c0_i32_11 : i32
    scf.if %30 {
      %c0_12 = arith.constant 0 : index
      %c0_13 = arith.constant 0 : index
      %c0_14 = arith.constant 0 : index
      %31 = vector.load %arg4[%c0_12, %c0_13, %c0_14] : memref<1x8x128xf32, #tpu.memory_space<vmem>>, vector<1x8x128xf32>
      %32 = vector.shape_cast %31 : vector<1x8x128xf32> to vector<8x128xf32>
      %33 = arith.addf %32, %14 : vector<8x128xf32>
      %c0_15 = arith.constant 0 : index
      %c0_16 = arith.constant 0 : index
      %c0_17 = arith.constant 0 : index
      %34 = vector.load %arg4[%c0_15, %c0_16, %c0_17] : memref<1x8x128xf32, #tpu.memory_space<vmem>>, vector<1x8x128xf32>
      %35 = vector.shape_cast %34 : vector<1x8x128xf32> to vector<8x128xf32>
      %36 = vector.shape_cast %33 : vector<8x128xf32> to vector<1x8x128xf32>
      tpu.vector_store %arg4[%c0_15, %c0_16, %c0_17], %36 {strides = array<i32>} : memref<1x8x128xf32, #tpu.memory_space<vmem>>, vector<1x8x128xf32>,
      %c0_18 = arith.constant 0 : index
      %c0_19 = arith.constant 0 : index
      %c0_20 = arith.constant 0 : index
      %37 = vector.load %arg5[%c0_18, %c0_19, %c0_20] : memref<1x8x128xf32, #tpu.memory_space<vmem>>, vector<1x8x128xf32>
      %38 = vector.shape_cast %37 : vector<1x8x128xf32> to vector<8x128xf32>
      %39 = arith.addf %38, %24 : vector<8x128xf32>
      %c0_21 = arith.constant 0 : index
      %c0_22 = arith.constant 0 : index
      %c0_23 = arith.constant 0 : index
      %40 = vector.load %arg5[%c0_21, %c0_22, %c0_23] : memref<1x8x128xf32, #tpu.memory_space<vmem>>, vector<1x8x128xf32>
      %41 = vector.shape_cast %40 : vector<1x8x128xf32> to vector<8x128xf32>
      %42 = vector.shape_cast %39 : vector<8x128xf32> to vector<1x8x128xf32>
      tpu.vector_store %arg5[%c0_21, %c0_22, %c0_23], %42 {strides = array<i32>} : memref<1x8x128xf32, #tpu.memory_space<vmem>>, vector<1x8x128xf32>,
    } else {
    }
    return
  }
  func.func @transform_0(%arg0: i32, %arg1: i32) -> (i32, i32) {
    %c0_i32 = arith.constant 0 : i32
    %c0_i32_0 = arith.constant 0 : i32
    return %arg0, %c0_i32 : i32, i32
  }
  func.func @transform_1(%arg0: i32, %arg1: i32) -> (i32, i32, i32) {
    %c0_i32 = arith.constant 0 : i32
    %c0_i32_0 = arith.constant 0 : i32
    return %arg1, %arg0, %c0_i32 : i32, i32, i32
  }
  func.func @transform_2(%arg0: i32, %arg1: i32) -> (i32, i32, i32) {
    %c0_i32 = arith.constant 0 : i32
    %c0_i32_0 = arith.constant 0 : i32
    %c0_i32_1 = arith.constant 0 : i32
    return %arg0, %c0_i32, %c0_i32_0 : i32, i32, i32
  }
  func.func @transform_3(%arg0: i32, %arg1: i32) -> (i32, i32, i32) {
    %c0_i32 = arith.constant 0 : i32
    %c0_i32_0 = arith.constant 0 : i32
    %c0_i32_1 = arith.constant 0 : i32
    return %arg0, %c0_i32, %c0_i32_0 : i32, i32, i32
  }
}

module attributes {stable_mosaic.version = 11 : i64} {
  func.func @_edge_epilogue_kernel(%arg0: i32, %arg1: i32, %arg2: memref<32x128xbf16, #tpu.memory_space<vmem>>, %arg3: memref<1x32x128xbf16, #tpu.memory_space<vmem>>, %arg4: memref<1x128xf32, #tpu.memory_space<vmem>>, %arg5: memref<1x128xf32, #tpu.memory_space<vmem>>, %arg6: memref<32x128xbf16, #tpu.memory_space<vmem>>) attributes {dimension_semantics = [#tpu.dimension_semantics<parallel>, #tpu.dimension_semantics<arbitrary>], iteration_bounds = array<i64: 1, 4>, scalar_prefetch = 0 : i64, scratch_operands = 0 : i64, tpu.core_type = #tpu.core_type<tc>, window_params = [{transform_indices = @transform_0, window_bounds = array<i64: 32, 128>}, {transform_indices = @transform_1, window_bounds = array<i64: 1, 32, 128>}, {pipeline_mode = #tpu.pipeline_mode<synchronous>, transform_indices = @transform_2, window_bounds = array<i64: 1, 128>}, {pipeline_mode = #tpu.pipeline_mode<synchronous>, transform_indices = @transform_3, window_bounds = array<i64: 1, 128>}, {transform_indices = @transform_4, window_bounds = array<i64: 32, 128>}]} {
    %c0 = arith.constant 0 : index
    %c0_0 = arith.constant 0 : index
    %0 = vector.load %arg2[%c0, %c0_0] : memref<32x128xbf16, #tpu.memory_space<vmem>>, vector<32x128xbf16>
    %1 = arith.extf %0 : vector<32x128xbf16> to vector<32x128xf32>
    %c0_1 = arith.constant 0 : index
    %c0_2 = arith.constant 0 : index
    %c0_3 = arith.constant 0 : index
    %2 = vector.load %arg3[%c0_1, %c0_2, %c0_3] : memref<1x32x128xbf16, #tpu.memory_space<vmem>>, vector<1x32x128xbf16>
    %3 = vector.shape_cast %2 : vector<1x32x128xbf16> to vector<32x128xbf16>
    %4 = arith.extf %3 : vector<32x128xbf16> to vector<32x128xf32>
    %5 = arith.addf %1, %4 : vector<32x128xf32>
    %c0_4 = arith.constant 0 : index
    %c0_5 = arith.constant 0 : index
    %6 = vector.load %arg4[%c0_4, %c0_5] : memref<1x128xf32, #tpu.memory_space<vmem>>, vector<1x128xf32>
    %7 = vector.broadcast %6 : vector<1x128xf32> to vector<32x128xf32>
    %8 = arith.mulf %5, %7 : vector<32x128xf32>
    %c0_6 = arith.constant 0 : index
    %c0_7 = arith.constant 0 : index
    %9 = vector.load %arg5[%c0_6, %c0_7] : memref<1x128xf32, #tpu.memory_space<vmem>>, vector<1x128xf32>
    %10 = vector.broadcast %9 : vector<1x128xf32> to vector<32x128xf32>
    %11 = arith.addf %8, %10 : vector<32x128xf32>
    %cst = arith.constant 0.000000e+00 : f32
    %12 = vector.broadcast %cst : f32 to vector<32x128xf32>
    %13 = arith.maximumf %11, %12 : vector<32x128xf32>
    %14 = arith.truncf %13 : vector<32x128xf32> to vector<32x128xbf16>
    %c0_i32 = arith.constant 0 : i32
    %15 = arith.cmpi eq, %arg1, %c0_i32 : i32
    %16 = arith.extui %15 : i1 to i32
    %c0_i32_8 = arith.constant 0 : i32
    %17 = arith.cmpi ne, %16, %c0_i32_8 : i32
    scf.if %17 {
      %c0_11 = arith.constant 0 : index
      %c0_12 = arith.constant 0 : index
      %21 = vector.load %arg6[%c0_11, %c0_12] : memref<32x128xbf16, #tpu.memory_space<vmem>>, vector<32x128xbf16>
      tpu.vector_store %arg6[%c0_11, %c0_12], %14 {strides = array<i32>} : memref<32x128xbf16, #tpu.memory_space<vmem>>, vector<32x128xbf16>,
    } else {
    }
    %c0_i32_9 = arith.constant 0 : i32
    %18 = arith.cmpi sgt, %arg1, %c0_i32_9 : i32
    %19 = arith.extui %18 : i1 to i32
    %c0_i32_10 = arith.constant 0 : i32
    %20 = arith.cmpi ne, %19, %c0_i32_10 : i32
    scf.if %20 {
      %c0_11 = arith.constant 0 : index
      %c0_12 = arith.constant 0 : index
      %21 = vector.load %arg6[%c0_11, %c0_12] : memref<32x128xbf16, #tpu.memory_space<vmem>>, vector<32x128xbf16>
      %22 = arith.maximumf %21, %14 : vector<32x128xbf16>
      %c0_13 = arith.constant 0 : index
      %c0_14 = arith.constant 0 : index
      %23 = vector.load %arg6[%c0_13, %c0_14] : memref<32x128xbf16, #tpu.memory_space<vmem>>, vector<32x128xbf16>
      tpu.vector_store %arg6[%c0_13, %c0_14], %22 {strides = array<i32>} : memref<32x128xbf16, #tpu.memory_space<vmem>>, vector<32x128xbf16>,
    } else {
    }
    return
  }
  func.func @transform_0(%arg0: i32, %arg1: i32) -> (i32, i32) {
    %c0_i32 = arith.constant 0 : i32
    %c0_i32_0 = arith.constant 0 : i32
    return %arg0, %c0_i32 : i32, i32
  }
  func.func @transform_1(%arg0: i32, %arg1: i32) -> (i32, i32, i32) {
    %c0_i32 = arith.constant 0 : i32
    %c0_i32_0 = arith.constant 0 : i32
    return %arg1, %arg0, %c0_i32 : i32, i32, i32
  }
  func.func @transform_2(%arg0: i32, %arg1: i32) -> (i32, i32) {
    %c0_i32 = arith.constant 0 : i32
    %c0_i32_0 = arith.constant 0 : i32
    %c0_i32_1 = arith.constant 0 : i32
    return %c0_i32, %c0_i32_0 : i32, i32
  }
  func.func @transform_3(%arg0: i32, %arg1: i32) -> (i32, i32) {
    %c0_i32 = arith.constant 0 : i32
    %c0_i32_0 = arith.constant 0 : i32
    %c0_i32_1 = arith.constant 0 : i32
    return %c0_i32, %c0_i32_0 : i32, i32
  }
  func.func @transform_4(%arg0: i32, %arg1: i32) -> (i32, i32) {
    %c0_i32 = arith.constant 0 : i32
    %c0_i32_0 = arith.constant 0 : i32
    return %arg0, %c0_i32 : i32, i32
  }
}

module attributes {stable_mosaic.version = 11 : i64} {
  func.func @_dual_matmul_kernel(%arg0: i32, %arg1: memref<32x16xbf16, #tpu.memory_space<vmem>>, %arg2: memref<16x128xbf16, #tpu.memory_space<vmem>>, %arg3: memref<16x128xbf16, #tpu.memory_space<vmem>>, %arg4: memref<32x128xbf16, #tpu.memory_space<vmem>>, %arg5: memref<32x128xbf16, #tpu.memory_space<vmem>>) attributes {dimension_semantics = [#tpu.dimension_semantics<parallel>], iteration_bounds = array<i64: 1>, scalar_prefetch = 0 : i64, scratch_operands = 0 : i64, tpu.core_type = #tpu.core_type<tc>, window_params = [{transform_indices = @transform_0, window_bounds = array<i64: 32, 16>}, {pipeline_mode = #tpu.pipeline_mode<synchronous>, transform_indices = @transform_1, window_bounds = array<i64: 16, 128>}, {pipeline_mode = #tpu.pipeline_mode<synchronous>, transform_indices = @transform_2, window_bounds = array<i64: 16, 128>}, {transform_indices = @transform_3, window_bounds = array<i64: 32, 128>}, {transform_indices = @transform_4, window_bounds = array<i64: 32, 128>}]} {
    %c0 = arith.constant 0 : index
    %c0_0 = arith.constant 0 : index
    %0 = vector.load %arg1[%c0, %c0_0] : memref<32x16xbf16, #tpu.memory_space<vmem>>, vector<32x16xbf16>
    %c0_1 = arith.constant 0 : index
    %c0_2 = arith.constant 0 : index
    %1 = vector.load %arg2[%c0_1, %c0_2] : memref<16x128xbf16, #tpu.memory_space<vmem>>, vector<16x128xbf16>
    %cst = arith.constant dense<0.000000e+00> : vector<32x128xf32>
    %2 = tpu.matmul %0, %1, %cst {dimension_numbers = #tpu.dot_dimension_numbers<[1], [0], [0], [1], [0, 0, 1, 1], [], []>} : vector<32x16xbf16>, vector<16x128xbf16>, vector<32x128xf32> -> vector<32x128xf32>
    %3 = arith.truncf %2 : vector<32x128xf32> to vector<32x128xbf16>
    %c0_3 = arith.constant 0 : index
    %c0_4 = arith.constant 0 : index
    %4 = vector.load %arg4[%c0_3, %c0_4] : memref<32x128xbf16, #tpu.memory_space<vmem>>, vector<32x128xbf16>
    tpu.vector_store %arg4[%c0_3, %c0_4], %3 {strides = array<i32>} : memref<32x128xbf16, #tpu.memory_space<vmem>>, vector<32x128xbf16>,
    %c0_5 = arith.constant 0 : index
    %c0_6 = arith.constant 0 : index
    %5 = vector.load %arg3[%c0_5, %c0_6] : memref<16x128xbf16, #tpu.memory_space<vmem>>, vector<16x128xbf16>
    %cst_7 = arith.constant dense<0.000000e+00> : vector<32x128xf32>
    %6 = tpu.matmul %0, %5, %cst_7 {dimension_numbers = #tpu.dot_dimension_numbers<[1], [0], [0], [1], [0, 0, 1, 1], [], []>} : vector<32x16xbf16>, vector<16x128xbf16>, vector<32x128xf32> -> vector<32x128xf32>
    %7 = arith.truncf %6 : vector<32x128xf32> to vector<32x128xbf16>
    %c0_8 = arith.constant 0 : index
    %c0_9 = arith.constant 0 : index
    %8 = vector.load %arg5[%c0_8, %c0_9] : memref<32x128xbf16, #tpu.memory_space<vmem>>, vector<32x128xbf16>
    tpu.vector_store %arg5[%c0_8, %c0_9], %7 {strides = array<i32>} : memref<32x128xbf16, #tpu.memory_space<vmem>>, vector<32x128xbf16>,
    return
  }
  func.func @transform_0(%arg0: i32) -> (i32, i32) {
    %c0_i32 = arith.constant 0 : i32
    %c0_i32_0 = arith.constant 0 : i32
    return %arg0, %c0_i32 : i32, i32
  }
  func.func @transform_1(%arg0: i32) -> (i32, i32) {
    %c0_i32 = arith.constant 0 : i32
    %c0_i32_0 = arith.constant 0 : i32
    %c0_i32_1 = arith.constant 0 : i32
    return %c0_i32, %c0_i32_0 : i32, i32
  }
  func.func @transform_2(%arg0: i32) -> (i32, i32) {
    %c0_i32 = arith.constant 0 : i32
    %c0_i32_0 = arith.constant 0 : i32
    %c0_i32_1 = arith.constant 0 : i32
    return %c0_i32, %c0_i32_0 : i32, i32
  }
  func.func @transform_3(%arg0: i32) -> (i32, i32) {
    %c0_i32 = arith.constant 0 : i32
    %c0_i32_0 = arith.constant 0 : i32
    return %arg0, %c0_i32 : i32, i32
  }
  func.func @transform_4(%arg0: i32) -> (i32, i32) {
    %c0_i32 = arith.constant 0 : i32
    %c0_i32_0 = arith.constant 0 : i32
    return %arg0, %c0_i32 : i32, i32
  }
}

module attributes {stable_mosaic.version = 11 : i64} {
  func.func @_matmul_stats_kernel(%arg0: i32, %arg1: memref<32x48xbf16, #tpu.memory_space<vmem>>, %arg2: memref<48x128xbf16, #tpu.memory_space<vmem>>, %arg3: memref<32x128xbf16, #tpu.memory_space<vmem>>, %arg4: memref<1x8x128xf32, #tpu.memory_space<vmem>>, %arg5: memref<1x8x128xf32, #tpu.memory_space<vmem>>) attributes {dimension_semantics = [#tpu.dimension_semantics<parallel>], iteration_bounds = array<i64: 1>, scalar_prefetch = 0 : i64, scratch_operands = 0 : i64, tpu.core_type = #tpu.core_type<tc>, window_params = [{transform_indices = @transform_0, window_bounds = array<i64: 32, 48>}, {pipeline_mode = #tpu.pipeline_mode<synchronous>, transform_indices = @transform_1, window_bounds = array<i64: 48, 128>}, {transform_indices = @transform_2, window_bounds = array<i64: 32, 128>}, {transform_indices = @transform_3, window_bounds = array<i64: 1, 8, 128>}, {transform_indices = @transform_4, window_bounds = array<i64: 1, 8, 128>}]} {
    %c0 = arith.constant 0 : index
    %c0_0 = arith.constant 0 : index
    %0 = vector.load %arg1[%c0, %c0_0] : memref<32x48xbf16, #tpu.memory_space<vmem>>, vector<32x48xbf16>
    %c0_1 = arith.constant 0 : index
    %c0_2 = arith.constant 0 : index
    %1 = vector.load %arg2[%c0_1, %c0_2] : memref<48x128xbf16, #tpu.memory_space<vmem>>, vector<48x128xbf16>
    %cst = arith.constant dense<0.000000e+00> : vector<32x128xf32>
    %2 = tpu.matmul %0, %1, %cst {dimension_numbers = #tpu.dot_dimension_numbers<[1], [0], [0], [1], [0, 0, 1, 1], [], []>} : vector<32x48xbf16>, vector<48x128xbf16>, vector<32x128xf32> -> vector<32x128xf32>
    %3 = arith.truncf %2 : vector<32x128xf32> to vector<32x128xbf16>
    %c0_3 = arith.constant 0 : index
    %c0_4 = arith.constant 0 : index
    %4 = vector.load %arg3[%c0_3, %c0_4] : memref<32x128xbf16, #tpu.memory_space<vmem>>, vector<32x128xbf16>
    tpu.vector_store %arg3[%c0_3, %c0_4], %3 {strides = array<i32>} : memref<32x128xbf16, #tpu.memory_space<vmem>>, vector<32x128xbf16>,
    %cst_5 = arith.constant dense<0.000000e+00> : vector<128xf32>
    %5 = vector.multi_reduction <add>, %2, %cst_5 [0] : vector<32x128xf32> to vector<128xf32>
    %6 = vector.shape_cast %5 : vector<128xf32> to vector<1x128xf32>
    %7 = tpu.iota {dimensions = array<i32: 0>} : vector<8x128xi32>
    %c0_i32 = arith.constant 0 : i32
    %8 = vector.broadcast %c0_i32 : i32 to vector<8x128xi32>
    %9 = arith.cmpi eq, %7, %8 : vector<8x128xi32>
    %10 = vector.shape_cast %6 : vector<1x128xf32> to vector<1x128xf32>
    %11 = vector.broadcast %10 : vector<1x128xf32> to vector<8x128xf32>
    %cst_6 = arith.constant 0.000000e+00 : f32
    %12 = vector.broadcast %cst_6 : f32 to vector<8x128xf32>
    %13 = arith.select %9, %11, %12 : vector<8x128xi1>, vector<8x128xf32>
    %c0_7 = arith.constant 0 : index
    %c0_8 = arith.constant 0 : index
    %c0_9 = arith.constant 0 : index
    %14 = vector.load %arg4[%c0_7, %c0_8, %c0_9] : memref<1x8x128xf32, #tpu.memory_space<vmem>>, vector<1x8x128xf32>
    %15 = vector.shape_cast %14 : vector<1x8x128xf32> to vector<8x128xf32>
    %16 = vector.shape_cast %13 : vector<8x128xf32> to vector<1x8x128xf32>
    tpu.vector_store %arg4[%c0_7, %c0_8, %c0_9], %16 {strides = array<i32>} : memref<1x8x128xf32, #tpu.memory_space<vmem>>, vector<1x8x128xf32>,
    %17 = arith.mulf %2, %2 : vector<32x128xf32>
    %cst_10 = arith.constant dense<0.000000e+00> : vector<128xf32>
    %18 = vector.multi_reduction <add>, %17, %cst_10 [0] : vector<32x128xf32> to vector<128xf32>
    %19 = vector.shape_cast %18 : vector<128xf32> to vector<1x128xf32>
    %20 = tpu.iota {dimensions = array<i32: 0>} : vector<8x128xi32>
    %c0_i32_11 = arith.constant 0 : i32
    %21 = vector.broadcast %c0_i32_11 : i32 to vector<8x128xi32>
    %22 = arith.cmpi eq, %20, %21 : vector<8x128xi32>
    %23 = vector.shape_cast %19 : vector<1x128xf32> to vector<1x128xf32>
    %24 = vector.broadcast %23 : vector<1x128xf32> to vector<8x128xf32>
    %cst_12 = arith.constant 0.000000e+00 : f32
    %25 = vector.broadcast %cst_12 : f32 to vector<8x128xf32>
    %26 = arith.select %22, %24, %25 : vector<8x128xi1>, vector<8x128xf32>
    %c0_13 = arith.constant 0 : index
    %c0_14 = arith.constant 0 : index
    %c0_15 = arith.constant 0 : index
    %27 = vector.load %arg5[%c0_13, %c0_14, %c0_15] : memref<1x8x128xf32, #tpu.memory_space<vmem>>, vector<1x8x128xf32>
    %28 = vector.shape_cast %27 : vector<1x8x128xf32> to vector<8x128xf32>
    %29 = vector.shape_cast %26 : vector<8x128xf32> to vector<1x8x128xf32>
    tpu.vector_store %arg5[%c0_13, %c0_14, %c0_15], %29 {strides = array<i32>} : memref<1x8x128xf32, #tpu.memory_space<vmem>>, vector<1x8x128xf32>,
    return
  }
  func.func @transform_0(%arg0: i32) -> (i32, i32) {
    %c0_i32 = arith.constant 0 : i32
    %c0_i32_0 = arith.constant 0 : i32
    return %arg0, %c0_i32 : i32, i32
  }
  func.func @transform_1(%arg0: i32) -> (i32, i32) {
    %c0_i32 = arith.constant 0 : i32
    %c0_i32_0 = arith.constant 0 : i32
    %c0_i32_1 = arith.constant 0 : i32
    return %c0_i32, %c0_i32_0 : i32, i32
  }
  func.func @transform_2(%arg0: i32) -> (i32, i32) {
    %c0_i32 = arith.constant 0 : i32
    %c0_i32_0 = arith.constant 0 : i32
    return %arg0, %c0_i32 : i32, i32
  }
  func.func @transform_3(%arg0: i32) -> (i32, i32, i32) {
    %c0_i32 = arith.constant 0 : i32
    %c0_i32_0 = arith.constant 0 : i32
    %c0_i32_1 = arith.constant 0 : i32
    return %arg0, %c0_i32, %c0_i32_0 : i32, i32, i32
  }
  func.func @transform_4(%arg0: i32) -> (i32, i32, i32) {
    %c0_i32 = arith.constant 0 : i32
    %c0_i32_0 = arith.constant 0 : i32
    %c0_i32_1 = arith.constant 0 : i32
    return %arg0, %c0_i32, %c0_i32_0 : i32, i32, i32
  }
}

module attributes {stable_mosaic.version = 11 : i64} {
  func.func @_point_epilogue_kernel(%arg0: i32, %arg1: memref<32x128xbf16, #tpu.memory_space<vmem>>, %arg2: memref<1x128xf32, #tpu.memory_space<vmem>>, %arg3: memref<1x128xf32, #tpu.memory_space<vmem>>, %arg4: memref<32x128xf32, #tpu.memory_space<vmem>>) attributes {dimension_semantics = [#tpu.dimension_semantics<parallel>], iteration_bounds = array<i64: 1>, scalar_prefetch = 0 : i64, scratch_operands = 0 : i64, tpu.core_type = #tpu.core_type<tc>, window_params = [{transform_indices = @transform_0, window_bounds = array<i64: 32, 128>}, {pipeline_mode = #tpu.pipeline_mode<synchronous>, transform_indices = @transform_1, window_bounds = array<i64: 1, 128>}, {pipeline_mode = #tpu.pipeline_mode<synchronous>, transform_indices = @transform_2, window_bounds = array<i64: 1, 128>}, {transform_indices = @transform_3, window_bounds = array<i64: 32, 128>}]} {
    %c0 = arith.constant 0 : index
    %c0_0 = arith.constant 0 : index
    %0 = vector.load %arg1[%c0, %c0_0] : memref<32x128xbf16, #tpu.memory_space<vmem>>, vector<32x128xbf16>
    %1 = arith.extf %0 : vector<32x128xbf16> to vector<32x128xf32>
    %c0_1 = arith.constant 0 : index
    %c0_2 = arith.constant 0 : index
    %2 = vector.load %arg2[%c0_1, %c0_2] : memref<1x128xf32, #tpu.memory_space<vmem>>, vector<1x128xf32>
    %3 = vector.broadcast %2 : vector<1x128xf32> to vector<32x128xf32>
    %4 = arith.mulf %1, %3 : vector<32x128xf32>
    %c0_3 = arith.constant 0 : index
    %c0_4 = arith.constant 0 : index
    %5 = vector.load %arg3[%c0_3, %c0_4] : memref<1x128xf32, #tpu.memory_space<vmem>>, vector<1x128xf32>
    %6 = vector.broadcast %5 : vector<1x128xf32> to vector<32x128xf32>
    %7 = arith.addf %4, %6 : vector<32x128xf32>
    %cst = arith.constant 0.000000e+00 : f32
    %8 = vector.broadcast %cst : f32 to vector<32x128xf32>
    %9 = arith.maximumf %7, %8 : vector<32x128xf32>
    %c0_5 = arith.constant 0 : index
    %c0_6 = arith.constant 0 : index
    %10 = vector.load %arg4[%c0_5, %c0_6] : memref<32x128xf32, #tpu.memory_space<vmem>>, vector<32x128xf32>
    tpu.vector_store %arg4[%c0_5, %c0_6], %9 {strides = array<i32>} : memref<32x128xf32, #tpu.memory_space<vmem>>, vector<32x128xf32>,
    return
  }
  func.func @transform_0(%arg0: i32) -> (i32, i32) {
    %c0_i32 = arith.constant 0 : i32
    %c0_i32_0 = arith.constant 0 : i32
    return %arg0, %c0_i32 : i32, i32
  }
  func.func @transform_1(%arg0: i32) -> (i32, i32) {
    %c0_i32 = arith.constant 0 : i32
    %c0_i32_0 = arith.constant 0 : i32
    %c0_i32_1 = arith.constant 0 : i32
    return %c0_i32, %c0_i32_0 : i32, i32
  }
  func.func @transform_2(%arg0: i32) -> (i32, i32) {
    %c0_i32 = arith.constant 0 : i32
    %c0_i32_0 = arith.constant 0 : i32
    %c0_i32_1 = arith.constant 0 : i32
    return %c0_i32, %c0_i32_0 : i32, i32
  }
  func.func @transform_3(%arg0: i32) -> (i32, i32) {
    %c0_i32 = arith.constant 0 : i32
    %c0_i32_0 = arith.constant 0 : i32
    return %arg0, %c0_i32 : i32, i32
  }
}

</mosaic_0001>

<llo_original>
// kernel: dgcnn_forward.10
$region0: #{dgcnn_forward.10}
  #allocation0 [shape = 'u32[]', space=smem, size = 0x4, offset = 0x4, fixed_abs, tag = 'smem constant byte address 0x4 - core index']
  #allocation1 [shape = 'u32[144,128]{1,0:T(1,128)}', space=vmem, size = 0x12000, scoped, tag = 'internal scratch']
  %s0 = inlined_call_operand.vmem [shape: bf16[32,3], index: 0, kind: input, shape index: {}]
  %s1 = inlined_call_operand.vmem [shape: bf16[3,128], index: 1, kind: input, shape index: {}]
  %s2 = inlined_call_operand.vmem [shape: bf16[3,128], index: 2, kind: input, shape index: {}]
  %s3 = inlined_call_operand.vmem [shape: bf16[32,128], index: 3, kind: output, shape index: {0}]
  %s4 = inlined_call_operand.vmem [shape: bf16[32,128], index: 4, kind: output, shape index: {1}]
  %5 = xla_tuple %s3, %s4
  %s6 = sld [smem:[#allocation0]]
  $region30: #{dgcnn_forward.10} parent=0
    _
  %s8 = ssub.s32 1, %s6
  %s9 = scalar_select 0, %s8, %s6
  // Predicated region
  $region2: #{dgcnn_forward.10} parent=0 // pred_check
    _
  $region3: #{dgcnn_forward.10} parent=0 // pred_check_branch
    %11 = sbr.rel (0) target = $region5
  $region4: #{dgcnn_forward.10} parent=0 // pred_region
    _
  $region5: #{dgcnn_forward.10} parent=0 // pred_fallthru
    _
  // Predicated region
  $region6: #{dgcnn_forward.10} parent=0 // pred_check
    _
  $region7: #{dgcnn_forward.10} parent=0 // pred_check_branch
    %13 = sbr.rel (0) target = $region9
  $region8: #{dgcnn_forward.10} parent=0 // pred_region
    _
  $region9: #{dgcnn_forward.10} parent=0 // pred_fallthru
    _
  // Predicated region
  $region10: #{dgcnn_forward.10} parent=0 // pred_check
    _
  $region11: #{dgcnn_forward.10} parent=0 // pred_check_branch
    %15 = sbr.rel (0) target = $region13
  $region12: #{dgcnn_forward.10} parent=0 // pred_region
    _
  $region13: #{dgcnn_forward.10} parent=0 // pred_fallthru
    _
  %v17 = vld [vmem:[%s0] sm:$0xf]
  %v18 = vld [vmem:[%s0 + $0x4] sm:$0xf]
  %v19 = vld [vmem:[%s0 + $0x8] sm:$0xf]
  %v20 = vld [vmem:[%s0 + $0xc] sm:$0xf]
  %v21 = vld [vmem:[%s1] sm:$0x3]
  %v26 = vunpack.c.l.b16 %v17
  %v27 = vunpack.c.l.b16 %v18
  %v28 = vunpack.c.l.b16 %v19
  %v29 = vunpack.c.l.b16 %v20
  %v30 = vpack.c.b16 %v27, %v26
  %v31 = vpack.c.b16 %v29, %v28
  %vm32 = vcmask 23552
  %v34 = vsel %vm32, %v30, 0
  %v37 = vsel %vm32, %v31, 0
  %vm39 = vcmask 1040384
  %vm40 = vcmask 1041408
  %v41 = vsel %vm39, 4294967295, 65535
  %v42 = vsel %vm40, %v41, 0
  %v44 = vand.u32 %v21, %v42
  %46 = vmatprep.subr.bf16.mxu0 0
  %47 = vmatpush1.bf16.msra.mxu0 %v44
  %48 = vmatprep.subr.bf16.mxu0 0
  %49 = vmatpush1.bf16.msra.mxu0 0
  %50 = vmatprep.subr.bf16.mxu0 0
  %51 = vmatpush1.bf16.msra.mxu0 0
  %52 = vmatprep.subr.bf16.mxu0 0
  %53 = vmatpush1.bf16.msra.mxu0 0
  %54 = vmatprep.subr.bf16.mxu0 0
  %55 = vmatpush1.bf16.msra.mxu0 0
  %56 = vmatprep.subr.bf16.mxu0 0
  %57 = vmatpush1.bf16.msra.mxu0 0
  %58 = vmatprep.subr.bf16.mxu0 0
  %59 = vmatpush1.bf16.msra.mxu0 0
  %60 = vmatprep.subr.bf16.mxu0 0
  %61 = vmatpush1.bf16.msra.mxu0 0
  %62 = vmatprep.subr.bf16.mxu0 0
  %63 = vmatpush1.bf16.msra.mxu0 0
  %64 = vmatprep.subr.bf16.mxu0 0
  %65 = vmatpush1.bf16.msra.mxu0 0
  %66 = vmatprep.subr.bf16.mxu0 0
  %67 = vmatpush1.bf16.msra.mxu0 0
  %68 = vmatprep.subr.bf16.mxu0 0
  %69 = vmatpush1.bf16.msra.mxu0 0
  %70 = vmatprep.subr.bf16.mxu0 0
  %71 = vmatpush1.bf16.msra.mxu0 0
  %72 = vmatprep.subr.bf16.mxu0 0
  %73 = vmatpush1.bf16.msra.mxu0 0
  %74 = vmatprep.subr.bf16.mxu0 0
  %75 = vmatpush1.bf16.msra.mxu0 0
  %76 = vmatprep.subr.bf16.mxu0 0
  %77 = vmatpush1.bf16.msra.mxu0 0
  %78 = vmatprep.mubr.bf16.mxu0 0
  %79 = vmatmul.mubr.bf16.gmra.mrb[0].mxu0 %v34
  %v80 = vpop.f32.mrb[0].mxu0
  %v81 = vadd.f32 0.0, %v80
  %v82 = vpop.f32.mrb[0].mxu0
  %v83 = vpop.f32.mrb[0].mxu0
  %v84 = vadd.f32 0.0, %v83
  %v85 = vpop.f32.mrb[0].mxu0
  %86 = vmatprep.mubr.bf16.mxu0 0
  %87 = vmatmul.mubr.bf16.gmra.mrb[0].mxu0 %v37
  %v88 = vpop.f32.mrb[0].mxu0
  %v89 = vadd.f32 0.0, %v88
  %v90 = vpop.f32.mrb[0].mxu0
  %v91 = vpop.f32.mrb[0].mxu0
  %v92 = vadd.f32 0.0, %v91
  %v93 = vpop.f32.mrb[0].mxu0
  %94 = vdwg.mxu0
  %v95 = vpack.c.bf16 %v84, %v81
  %v96 = vpack.c.bf16 %v92, %v89
  %v99 = vunpack.c.l.b16 %v95
  %v100 = vunpack.c.h.b16 %v95
  %v101 = vunpack.c.l.b16 %v96
  %v102 = vunpack.c.h.b16 %v96
  %v103 = vpack.c.b16 %v99, %v99
  %v104 = vpack.c.b16 %v100, %v100
  %v105 = vpack.c.b16 %v101, %v101
  %v106 = vpack.c.b16 %v102, %v102
  %111 = vst [vmem:[%s3] sm:$0xf] %v103
  %112 = vst [vmem:[%s3 + $0x4] sm:$0xf] %v104
  %113 = vst [vmem:[%s3 + $0x8] sm:$0xf] %v105
  %114 = vst [vmem:[%s3 + $0xc] sm:$0xf] %v106
  %v115 = vld [vmem:[%s2] sm:$0x3]
  %v117 = vand.u32 %v115, %v42
  %119 = vmatprep.subr.bf16.mxu0 0
  %120 = vmatpush1.bf16.msra.mxu0 %v117
  %121 = vmatprep.subr.bf16.mxu0 0
  %122 = vmatpush1.bf16.msra.mxu0 0
  %123 = vmatprep.subr.bf16.mxu0 0
  %124 = vmatpush1.bf16.msra.mxu0 0
  %125 = vmatprep.subr.bf16.mxu0 0
  %126 = vmatpush1.bf16.msra.mxu0 0
  %127 = vmatprep.subr.bf16.mxu0 0
  %128 = vmatpush1.bf16.msra.mxu0 0
  %129 = vmatprep.subr.bf16.mxu0 0
  %130 = vmatpush1.bf16.msra.mxu0 0
  %131 = vmatprep.subr.bf16.mxu0 0
  %132 = vmatpush1.bf16.msra.mxu0 0
  %133 = vmatprep.subr.bf16.mxu0 0
  %134 = vmatpush1.bf16.msra.mxu0 0
  %135 = vmatprep.subr.bf16.mxu0 0
  %136 = vmatpush1.bf16.msra.mxu0 0
  %137 = vmatprep.subr.bf16.mxu0 0
  %138 = vmatpush1.bf16.msra.mxu0 0
  %139 = vmatprep.subr.bf16.mxu0 0
  %140 = vmatpush1.bf16.msra.mxu0 0
  %141 = vmatprep.subr.bf16.mxu0 0
  %142 = vmatpush1.bf16.msra.mxu0 0
  %143 = vmatprep.subr.bf16.mxu0 0
  %144 = vmatpush1.bf16.msra.mxu0 0
  %145 = vmatprep.subr.bf16.mxu0 0
  %146 = vmatpush1.bf16.msra.mxu0 0
  %147 = vmatprep.subr.bf16.mxu0 0
  %148 = vmatpush1.bf16.msra.mxu0 0
  %149 = vmatprep.subr.bf16.mxu0 0
  %150 = vmatpush1.bf16.msra.mxu0 0
  %151 = vmatprep.mubr.bf16.mxu0 0
  %152 = vmatmul.mubr.bf16.gmra.mrb[0].mxu0 %v34
  %v153 = vpop.f32.mrb[0].mxu0
  %v154 = vadd.f32 0.0, %v153
  %v155 = vpop.f32.mrb[0].mxu0
  %v156 = vpop.f32.mrb[0].mxu0
  %v157 = vadd.f32 0.0, %v156
  %v158 = vpop.f32.mrb[0].mxu0
  %159 = vmatprep.mubr.bf16.mxu0 0
  %160 = vmatmul.mubr.bf16.gmra.mrb[0].mxu0 %v37
  %v161 = vpop.f32.mrb[0].mxu0
  %v162 = vadd.f32 0.0, %v161
  %v163 = vpop.f32.mrb[0].mxu0
  %v164 = vpop.f32.mrb[0].mxu0
  %v165 = vadd.f32 0.0, %v164
  %v166 = vpop.f32.mrb[0].mxu0
  %167 = vdwg.mxu0
  %v168 = vpack.c.bf16 %v157, %v154
  %v169 = vpack.c.bf16 %v165, %v162
  %v172 = vunpack.c.l.b16 %v168
  %v173 = vunpack.c.h.b16 %v168
  %v174 = vunpack.c.l.b16 %v169
  %v175 = vunpack.c.h.b16 %v169
  %v176 = vpack.c.b16 %v172, %v172
  %v177 = vpack.c.b16 %v173, %v173
  %v178 = vpack.c.b16 %v174, %v174
  %v179 = vpack.c.b16 %v175, %v175
  %184 = vst [vmem:[%s4] sm:$0xf] %v176
  %185 = vst [vmem:[%s4 + $0x4] sm:$0xf] %v177
  %186 = vst [vmem:[%s4 + $0x8] sm:$0xf] %v178
  %187 = vst [vmem:[%s4 + $0xc] sm:$0xf] %v179
  // Predicated region
  $region14: #{dgcnn_forward.10} parent=0 // pred_check
    _
  $region15: #{dgcnn_forward.10} parent=0 // pred_check_branch
    %189 = sbr.rel (0) target = $region17
  $region16: #{dgcnn_forward.10} parent=0 // pred_region
    _
  $region17: #{dgcnn_forward.10} parent=0 // pred_fallthru
    _
  // Predicated region
  $region18: #{dgcnn_forward.10} parent=0 // pred_check
    _
  $region19: #{dgcnn_forward.10} parent=0 // pred_check_branch
    %191 = sbr.rel (0) target = $region21
  $region20: #{dgcnn_forward.10} parent=0 // pred_region
    _
  $region21: #{dgcnn_forward.10} parent=0 // pred_fallthru
    _
  // Predicated region
  $region22: #{dgcnn_forward.10} parent=0 // pred_check
    _
  $region23: #{dgcnn_forward.10} parent=0 // pred_check_branch
    %193 = sbr.rel (0) target = $region25
  $region24: #{dgcnn_forward.10} parent=0 // pred_region
    _
  $region25: #{dgcnn_forward.10} parent=0 // pred_fallthru
    _
  // Predicated region
  $region26: #{dgcnn_forward.10} parent=0 // pred_check
    _
  $region27: #{dgcnn_forward.10} parent=0 // pred_check_branch
    %195 = sbr.rel (0) target = $region29
  $region28: #{dgcnn_forward.10} parent=0 // pred_region
    _
  $region29: #{dgcnn_forward.10} parent=0 // pred_fallthru
    _

// kernel: dgcnn_forward.9
$region0: #{dgcnn_forward.9}
  #allocation0 [shape = 'u32[]', space=smem, size = 0x4, offset = 0x4, fixed_abs, tag = 'smem constant byte address 0x4 - core index']
  #allocation1 [shape = 'u32[144,128]{1,0:T(1,128)}', space=vmem, size = 0x12000, scoped, tag = 'internal scratch']
  %s0 = inlined_call_operand.vmem [shape: f32[2,128,3], index: 0, kind: input, shape index: {}]
  %s1 = inlined_call_operand.vmem [shape: f32[2,3,128], index: 1, kind: input, shape index: {}]
  %s2 = inlined_call_operand.vmem [shape: f32[2,128,128], index: 2, kind: output, shape index: {}]
  %s3 = sld [smem:[#allocation0]]
  $region41: #{dgcnn_forward.9} parent=0
    _
  %s5 = ssub.s32 1, %s3
  %s6 = scalar_select 0, %s5, %s3
  loop: start=0, step=1, limit=4
  $region2: #{dgcnn_forward.9} parent=0 // loop_pre_header
    _
  $region3: #{dgcnn_forward.9} parent=0 // loop_header
    %s8 = sphi 0, %s12
    %p9 = scmp.ge.s32.totalorder %s8, 4
    %s15 = sphi 0, %s34
    %s16 = sphi 0, %s30
    %s17 = sphi 0, %s26
    %s18 = sphi 0, %s15
    %s19 = sphi 0, %s16
    %s20 = sphi 0, %s17
    %s21 = sphi 0, %s18
    %s22 = sphi 0, %s19
    %s23 = sphi 0, %s20
    %s39 = sphi 0, %s41
    %s42 = sphi 0, %s39
    %s43 = sphi 0, %s42
    %s59 = sphi 0, %s43
    %s67 = sphi 0, %s69
    %s70 = sphi 0, %s67
    %s71 = sphi 0, %s70
    %s87 = sphi 0, %s71
    %s97 = sphi 0, %s99
    %s100 = sphi 0, %s97
    %s101 = sphi 0, %s100
    %s117 = sphi 0, %s101
  $region4: #{dgcnn_forward.9} parent=0 // loop_header_branch
    %11 = sbr.rel (%p9) target = $region8
  $region5: #{dgcnn_forward.9} parent=0 // loop_body
    %s13 = ssub.s32 %s8, 1
    %s14 = ssub.s32 %s8, 2
    %s24 = sadd.s32 1, %s17
    %p25 = scmp.ge.s32.totalorder %s24, 1
    %s26 = scalar_select %p25, 0, %s24
    %s27 = sadd.s32 1, %s16
    %s28 = scalar_select %p25, %s27, %s16
    %p29 = scmp.ge.s32.totalorder %s28, 1
    %s30 = scalar_select %p29, 0, %s28
    %s31 = sadd.s32 1, %s15
    %s32 = scalar_select %p29, %s31, %s15
    %p33 = scmp.ge.s32.totalorder %s32, 2
    %s34 = scalar_select %p33, 0, %s32
    %s35 = ssub.s32 %s15, %s34
    %s36 = ssub.s32 %s16, %s30
    %s37 = sor.u32 %s35, %s36
    %p38 = scmp.eq.s32.totalorder %s37, 0
    %s40 = sadd.s32 %s39, 1
    %s41 = scalar_select %p38, %s39, %s40
    %p44 = pneg %p38
    %p45 = scmp.eq.s32.totalorder %s8, 1
    %p46 = por %p44, %p45
    %p47 = scmp.ne.s32.totalorder %s39, %s42
    %p48 = scmp.eq.s32.totalorder %s8, 0
    %p49 = por %p47, %p48
    %p50 = scmp.ne.s32.totalorder %s39, %s42
    %p51 = scmp.eq.s32.totalorder %s13, 1
    %p52 = por %p50, %p51
    %p53 = scmp.ne.s32.totalorder %s42, %s43
    %p54 = scmp.eq.s32.totalorder %s13, 0
    %p55 = por %p53, %p54
    %p56 = scmp.ne.s32.totalorder %s42, %s43
    %p57 = scmp.eq.s32.totalorder %s14, 1
    %p58 = por %p56, %p57
    %p60 = scmp.ne.s32.totalorder %s43, %s59
    %p61 = scmp.eq.s32.totalorder %s14, 0
    %p62 = por %p60, %p61
    %s63 = ssub.s32 %s15, %s34
    %s64 = ssub.s32 %s17, %s26
    %s65 = sor.u32 %s63, %s64
    %p66 = scmp.eq.s32.totalorder %s65, 0
    %s68 = sadd.s32 %s67, 1
    %s69 = scalar_select %p66, %s67, %s68
    %p72 = pneg %p66
    %p73 = scmp.eq.s32.totalorder %s8, 1
    %p74 = por %p72, %p73
    %p75 = scmp.ne.s32.totalorder %s67, %s70
    %p76 = scmp.eq.s32.totalorder %s8, 0
    %p77 = por %p75, %p76
    %p78 = scmp.ne.s32.totalorder %s67, %s70
    %p79 = scmp.eq.s32.totalorder %s13, 1
    %p80 = por %p78, %p79
    %p81 = scmp.ne.s32.totalorder %s70, %s71
    %p82 = scmp.eq.s32.totalorder %s13, 0
    %p83 = por %p81, %p82
    %p84 = scmp.ne.s32.totalorder %s70, %s71
    %p85 = scmp.eq.s32.totalorder %s14, 1
    %p86 = por %p84, %p85
    %p88 = scmp.ne.s32.totalorder %s71, %s87
    %p89 = scmp.eq.s32.totalorder %s14, 0
    %p90 = por %p88, %p89
    %s91 = ssub.s32 %s15, %s34
    %s92 = ssub.s32 %s16, %s30
    %s93 = sor.u32 %s91, %s92
    %s94 = ssub.s32 %s17, %s26
    %s95 = sor.u32 %s93, %s94
    %p96 = scmp.eq.s32.totalorder %s95, 0
    %s98 = sadd.s32 %s97, 1
    %s99 = scalar_select %p96, %s97, %s98
    %p102 = pneg %p96
    %p103 = scmp.eq.s32.totalorder %s8, 1
    %p104 = por %p102, %p103
    %p105 = scmp.ne.s32.totalorder %s97, %s100
    %p106 = scmp.eq.s32.totalorder %s8, 0
    %p107 = por %p105, %p106
    %p108 = scmp.ne.s32.totalorder %s97, %s100
    %p109 = scmp.eq.s32.totalorder %s13, 1
    %p110 = por %p108, %p109
    %p111 = scmp.ne.s32.totalorder %s100, %s101
    %p112 = scmp.eq.s32.totalorder %s13, 0
    %p113 = por %p111, %p112
    %p114 = scmp.ne.s32.totalorder %s100, %s101
    %p115 = scmp.eq.s32.totalorder %s14, 1
    %p116 = por %p114, %p115
    %p118 = scmp.ne.s32.totalorder %s101, %s117
    %p119 = scmp.eq.s32.totalorder %s14, 0
    %p120 = por %p118, %p119
    %p121 = scmp.le.s32.totalorder 1, %s8
    %p122 = scmp.lt.s32.totalorder %s8, 3
    %p123 = pnand %p121, %p122
    %p124 = pneg %p123
    // Predicated region
    $region9: #{dgcnn_forward.9} parent=5 // pred_check
      _
    $region10: #{dgcnn_forward.9} parent=5 // pred_check_branch
      %126 = sbr.rel (%p123) target = $region12
    $region11: #{dgcnn_forward.9} parent=5 // pred_region
      %s127 = ssub.s32 %s8, 1
    $region12: #{dgcnn_forward.9} parent=5 // pred_fallthru
      _
    %p128 = scmp.lt.s32.totalorder %s8, 2
    // Predicated region
    $region13: #{dgcnn_forward.9} parent=5 // pred_check
      %p129 = pneg %p128
    $region14: #{dgcnn_forward.9} parent=5 // pred_check_branch
      %131 = sbr.rel (%p129) target = $region16
    $region15: #{dgcnn_forward.9} parent=5 // pred_region
      // Predicated region
      $region17: #{dgcnn_forward.9} parent=15 // pred_check
        %p132 = pneg %p49
      $region18: #{dgcnn_forward.9} parent=15 // pred_check_branch
        %134 = sbr.rel (%p132) target = $region20
      $region19: #{dgcnn_forward.9} parent=15 // pred_region
        %s135 = smul.u32 16, %s16
        %p136 = scmp.lt.s32.totalorder %s15, 1
        %s137 = scalar_select %p136, %s15, 1
        %p138 = scmp.lt.s32.totalorder %s135, 15
        %s139 = scalar_select %p138, %s135, 15
        %s140 = smul.addr %s137, 16
        %s141 = sadd.s32 %s139, %s140
        %s142 = smul.addr %s141, 8
        %s143 = scalar_lea.vmem %s0, %s142
        %s144 = smul.u32 16, %s16
      $region20: #{dgcnn_forward.9} parent=15 // pred_fallthru
        _
      // Predicated region
      $region21: #{dgcnn_forward.9} parent=15 // pred_check
        %p145 = pneg %p77
      $region22: #{dgcnn_forward.9} parent=15 // pred_check_branch
        %147 = sbr.rel (%p145) target = $region24
      $region23: #{dgcnn_forward.9} parent=15 // pred_region
        %p148 = scmp.lt.s32.totalorder %s15, 1
        %s149 = scalar_select %p148, %s15, 1
        %p150 = scmp.lt.s32.totalorder %s17, 0
        %s151 = scalar_select %p150, %s17, 0
        %s152 = sadd.s32 %s151, %s149
        %s153 = smul.addr %s152, 4
        %s154 = scalar_lea.vmem %s1, %s153
      $region24: #{dgcnn_forward.9} parent=15 // pred_fallthru
        _
    $region16: #{dgcnn_forward.9} parent=5 // pred_fallthru
      _
    %p155 = scmp.le.s32.totalorder 1, %s8
    %p156 = scmp.lt.s32.totalorder %s8, 3
    %p157 = pnand %p155, %p156
    %p158 = pneg %p157
    // Predicated region
    $region25: #{dgcnn_forward.9} parent=5 // pred_check
      _
    $region26: #{dgcnn_forward.9} parent=5 // pred_check_branch
      %160 = sbr.rel (%p157) target = $region28
    $region27: #{dgcnn_forward.9} parent=5 // pred_region
      %s161 = ssub.s32 %s8, 1
      %s162 = smul.u32 16, %s19
      %p163 = scmp.lt.s32.totalorder %s18, 1
      %s164 = scalar_select %p163, %s18, 1
      %p165 = scmp.lt.s32.totalorder %s162, 15
      %s166 = scalar_select %p165, %s162, 15
      %s167 = smul.addr %s164, 16
      %s168 = sadd.s32 %s166, %s167
      %s169 = smul.addr %s168, 8
      %s170 = scalar_lea.vmem %s0, %s169
      %p171 = pneg %p55
      %p172 = pneg %p52
      %p173 = scmp.lt.s32.totalorder %s18, 1
      %s174 = scalar_select %p173, %s18, 1
      %p175 = scmp.lt.s32.totalorder %s20, 0
      %s176 = scalar_select %p175, %s20, 0
      %s177 = sadd.s32 %s176, %s174
      %s178 = smul.addr %s177, 4
      %s179 = scalar_lea.vmem %s1, %s178
      %p180 = pneg %p83
      %p181 = pneg %p80
      %p182 = pneg %p113
      %p183 = pneg %p110
      %s184 = smul.u32 16, %s19
      %p185 = scmp.lt.s32.totalorder %s18, 1
      %s186 = scalar_select %p185, %s18, 1
      %p187 = scmp.lt.s32.totalorder %s184, 15
      %s188 = scalar_select %p187, %s184, 15
      %p189 = scmp.lt.s32.totalorder %s20, 0
      %s190 = scalar_select %p189, %s20, 0
      %s191 = sadd.s32 %s190, %s188
      %s192 = smul.addr %s186, 16
      %s193 = sadd.s32 %s191, %s192
      %s194 = smul.addr %s193, 8
      %s195 = scalar_lea.vmem %s2, %s194
      %s196 = smul.u32 16, %s19
      %p197 = scmp.lt.s32.totalorder %s18, 1
      %s198 = scalar_select %p197, %s18, 1
      %p199 = scmp.lt.s32.totalorder %s196, 15
      %s200 = scalar_select %p199, %s196, 15
      %s201 = smul.addr %s198, 16
      %s202 = sadd.s32 %s200, %s201
      %s203 = smul.addr %s202, 8
      %s204 = scalar_lea.vmem %s0, %s203
      %s205 = smul.u32 16, %s19
      %p206 = scmp.lt.s32.totalorder %s18, 1
      %s207 = scalar_select %p206, %s18, 1
      %p208 = scmp.lt.s32.totalorder %s20, 0
      %s209 = scalar_select %p208, %s20, 0
      %s210 = sadd.s32 %s209, %s207
      %s211 = smul.addr %s210, 4
      %s212 = scalar_lea.vmem %s1, %s211
      %s213 = smul.u32 16, %s19
      %p214 = scmp.lt.s32.totalorder %s18, 1
      %s215 = scalar_select %p214, %s18, 1
      %p216 = scmp.lt.s32.totalorder %s213, 15
      %s217 = scalar_select %p216, %s213, 15
      %p218 = scmp.lt.s32.totalorder %s20, 0
      %s219 = scalar_select %p218, %s20, 0
      %s220 = sadd.s32 %s219, %s217
      %s221 = smul.addr %s215, 16
      %s222 = sadd.s32 %s220, %s221
      %s223 = smul.addr %s222, 8
      %s224 = scalar_lea.vmem %s2, %s223
      %s225 = smul.u32 16, %s19
      %v226 = vld [vmem:[%s204] sm:$0xff]
      %v227 = vld [vmem:[%s204 + $0x8] sm:$0xff]
      %v228 = vld [vmem:[%s204 + $0x10] sm:$0xff]
      %v229 = vld [vmem:[%s204 + $0x18] sm:$0xff]
      %v230 = vld [vmem:[%s204 + $0x20] sm:$0xff]
      %v231 = vld [vmem:[%s204 + $0x28] sm:$0xff]
      %v232 = vld [vmem:[%s204 + $0x30] sm:$0xff]
      %v233 = vld [vmem:[%s204 + $0x38] sm:$0xff]
      %v234 = vld [vmem:[%s204 + $0x40] sm:$0xff]
      %v235 = vld [vmem:[%s204 + $0x48] sm:$0xff]
      %v236 = vld [vmem:[%s204 + $0x50] sm:$0xff]
      %v237 = vld [vmem:[%s204 + $0x58] sm:$0xff]
      %v238 = vld [vmem:[%s204 + $0x60] sm:$0xff]
      %v239 = vld [vmem:[%s204 + $0x68] sm:$0xff]
      %v240 = vld [vmem:[%s204 + $0x70] sm:$0xff]
      %v241 = vld [vmem:[%s204 + $0x78] sm:$0xff]
      %v242 = vld [vmem:[%s212] sm:$0x7]
      %v243 = vmul.f32 %v226, %v226
      %v244 = vmul.f32 %v227, %v227
      %v245 = vmul.f32 %v228, %v228
      %v246 = vmul.f32 %v229, %v229
      %v247 = vmul.f32 %v230, %v230
      %v248 = vmul.f32 %v231, %v231
      %v249 = vmul.f32 %v232, %v232
      %v250 = vmul.f32 %v233, %v233
      %v251 = vmul.f32 %v234, %v234
      %v252 = vmul.f32 %v235, %v235
      %v253 = vmul.f32 %v236, %v236
      %v254 = vmul.f32 %v237, %v237
      %v255 = vmul.f32 %v238, %v238
      %v256 = vmul.f32 %v239, %v239
      %v257 = vmul.f32 %v240, %v240
      %v258 = vmul.f32 %v241, %v241
      %vm259 = vcmask 23552
      %v260 = vsel %vm259, %v243, 0.0
      %261 = vadd.xlane.f32.xlu0 %v260
      %v262 = vpop.xlane.xlu0 %261
      %v263 = vsel %vm259, %v244, 0.0
      %264 = vadd.xlane.f32.xlu0 %v263
      %v265 = vpop.xlane.xlu0 %264
      %v266 = vsel %vm259, %v245, 0.0
      %267 = vadd.xlane.f32.xlu0 %v266
      %v268 = vpop.xlane.xlu0 %267
      %v269 = vsel %vm259, %v246, 0.0
      %270 = vadd.xlane.f32.xlu0 %v269
      %v271 = vpop.xlane.xlu0 %270
      %v272 = vsel %vm259, %v247, 0.0
      %273 = vadd.xlane.f32.xlu0 %v272
      %v274 = vpop.xlane.xlu0 %273
      %v275 = vsel %vm259, %v248, 0.0
      %276 = vadd.xlane.f32.xlu0 %v275
      %v277 = vpop.xlane.xlu0 %276
      %v278 = vsel %vm259, %v249, 0.0
      %279 = vadd.xlane.f32.xlu0 %v278
      %v280 = vpop.xlane.xlu0 %279
      %v281 = vsel %vm259, %v250, 0.0
      %282 = vadd.xlane.f32.xlu0 %v281
      %v283 = vpop.xlane.xlu0 %282
      %v284 = vsel %vm259, %v251, 0.0
      %285 = vadd.xlane.f32.xlu0 %v284
      %v286 = vpop.xlane.xlu0 %285
      %v287 = vsel %vm259, %v252, 0.0
      %288 = vadd.xlane.f32.xlu0 %v287
      %v289 = vpop.xlane.xlu0 %288
      %v290 = vsel %vm259, %v253, 0.0
      %291 = vadd.xlane.f32.xlu0 %v290
      %v292 = vpop.xlane.xlu0 %291
      %v293 = vsel %vm259, %v254, 0.0
      %294 = vadd.xlane.f32.xlu0 %v293
      %v295 = vpop.xlane.xlu0 %294
      %v296 = vsel %vm259, %v255, 0.0
      %297 = vadd.xlane.f32.xlu0 %v296
      %v298 = vpop.xlane.xlu0 %297
      %v299 = vsel %vm259, %v256, 0.0
      %300 = vadd.xlane.f32.xlu0 %v299
      %v301 = vpop.xlane.xlu0 %300
      %v302 = vsel %vm259, %v257, 0.0
      %303 = vadd.xlane.f32.xlu0 %v302
      %v304 = vpop.xlane.xlu0 %303
      %v305 = vsel %vm259, %v258, 0.0
      %306 = vadd.xlane.f32.xlu0 %v305
      %v307 = vpop.xlane.xlu0 %306
      %v308 = vmul.f32 %v242, %v242
      %vm309 = vcmask 1042432
      %v310 = vsel %vm309, %v308, 0.0
      %v311 = vrot.slane %v310, 4
      %v312 = vadd.f32 %v310, %v311
      %v313 = vrot.slane %v312, 2
      %v314 = vadd.f32 %v312, %v313
      %v315 = vrot.slane %v314, 1
      %v316 = vadd.f32 %v314, %v315
      %v318 = vsel %vm259, %v226, 0
      %v321 = vsel %vm259, %v227, 0
      %v324 = vsel %vm259, %v228, 0
      %v327 = vsel %vm259, %v229, 0
      %v330 = vsel %vm259, %v230, 0
      %v333 = vsel %vm259, %v231, 0
      %v336 = vsel %vm259, %v232, 0
      %v339 = vsel %vm259, %v233, 0
      %v342 = vsel %vm259, %v234, 0
      %v345 = vsel %vm259, %v235, 0
      %v348 = vsel %vm259, %v236, 0
      %v351 = vsel %vm259, %v237, 0
      %v354 = vsel %vm259, %v238, 0
      %v357 = vsel %vm259, %v239, 0
      %v360 = vsel %vm259, %v240, 0
      %v363 = vsel %vm259, %v241, 0
      %v366 = vsel %vm309, %v242, 0
      %368 = vmatprep.subr.mxu0 0.0
      %369 = vmatpush1.msra.mxu0 %v366
      %370 = vmatprep.subr.mxu0 0.0
      %371 = vmatpush1.msra.mxu0 0.0
      %372 = vmatprep.subr.mxu0 0.0
      %373 = vmatpush1.msra.mxu0 0.0
      %374 = vmatprep.subr.mxu0 0.0
      %375 = vmatpush1.msra.mxu0 0.0
      %376 = vmatprep.subr.mxu0 0.0
      %377 = vmatpush1.msra.mxu0 0.0
      %378 = vmatprep.subr.mxu0 0.0
      %379 = vmatpush1.msra.mxu0 0.0
      %380 = vmatprep.subr.mxu0 0.0
      %381 = vmatpush1.msra.mxu0 0.0
      %382 = vmatprep.subr.mxu0 0.0
      %383 = vmatpush1.msra.mxu0 0.0
      %384 = vmatprep.subr.mxu0 0.0
      %385 = vmatpush1.msra.mxu0 0.0
      %386 = vmatprep.subr.mxu0 0.0
      %387 = vmatpush1.msra.mxu0 0.0
      %388 = vmatprep.subr.mxu0 0.0
      %389 = vmatpush1.msra.mxu0 0.0
      %390 = vmatprep.subr.mxu0 0.0
      %391 = vmatpush1.msra.mxu0 0.0
      %392 = vmatprep.subr.mxu0 0.0
      %393 = vmatpush1.msra.mxu0 0.0
      %394 = vmatprep.subr.mxu0 0.0
      %395 = vmatpush1.msra.mxu0 0.0
      %396 = vmatprep.subr.mxu0 0.0
      %397 = vmatpush1.msra.mxu0 0.0
      %398 = vmatprep.subr.mxu0 0.0
      %399 = vmatpush1.msra.mxu0 0.0
      %400 = vmatprep.subr.mxu0 0.0
      %401 = vmatpush1.msra.mxu0 0.0
      %402 = vmatprep.subr.mxu0 0.0
      %403 = vmatpush1.msra.mxu0 0.0
      %404 = vmatprep.subr.mxu0 0.0
      %405 = vmatpush1.msra.mxu0 0.0
      %406 = vmatprep.subr.mxu0 0.0
      %407 = vmatpush1.msra.mxu0 0.0
      %408 = vmatprep.subr.mxu0 0.0
      %409 = vmatpush1.msra.mxu0 0.0
      %410 = vmatprep.subr.mxu0 0.0
      %411 = vmatpush1.msra.mxu0 0.0
      %412 = vmatprep.subr.mxu0 0.0
      %413 = vmatpush1.msra.mxu0 0.0
      %414 = vmatprep.subr.mxu0 0.0
      %415 = vmatpush1.msra.mxu0 0.0
      %416 = vmatprep.subr.mxu0 0.0
      %417 = vmatpush1.msra.mxu0 0.0
      %418 = vmatprep.subr.mxu0 0.0
      %419 = vmatpush1.msra.mxu0 0.0
      %420 = vmatprep.subr.mxu0 0.0
      %421 = vmatpush1.msra.mxu0 0.0
      %422 = vmatprep.subr.mxu0 0.0
      %423 = vmatpush1.msra.mxu0 0.0
      %424 = vmatprep.subr.mxu0 0.0
      %425 = vmatpush1.msra.mxu0 0.0
      %426 = vmatprep.subr.mxu0 0.0
      %427 = vmatpush1.msra.mxu0 0.0
      %428 = vmatprep.subr.mxu0 0.0
      %429 = vmatpush1.msra.mxu0 0.0
      %430 = vmatprep.subr.mxu0 0.0
      %431 = vmatpush1.msra.mxu0 0.0
      %432 = vmatprep.mubr.f32.mxu0 0.0
      %433 = vmatmul.mubr.f32.gmra.mrb[0].mxu0 %v318
      %v434 = vpop.f32.mrb[0].mxu0
      %v435 = vadd.f32 0.0, %v434
      %v436 = vpop.f32.mrb[0].mxu0
      %437 = vmatprep.mubr.f32.mxu0 0.0
      %438 = vmatmul.mubr.f32.gmra.mrb[0].mxu0 %v321
      %v439 = vpop.f32.mrb[0].mxu0
      %v440 = vadd.f32 0.0, %v439
      %v441 = vpop.f32.mrb[0].mxu0
      %442 = vmatprep.mubr.f32.mxu0 0.0
      %443 = vmatmul.mubr.f32.gmra.mrb[0].mxu0 %v324
      %v444 = vpop.f32.mrb[0].mxu0
      %v445 = vadd.f32 0.0, %v444
      %v446 = vpop.f32.mrb[0].mxu0
      %447 = vmatprep.mubr.f32.mxu0 0.0
      %448 = vmatmul.mubr.f32.gmra.mrb[0].mxu0 %v327
      %v449 = vpop.f32.mrb[0].mxu0
      %v450 = vadd.f32 0.0, %v449
      %v451 = vpop.f32.mrb[0].mxu0
      %452 = vmatprep.mubr.f32.mxu0 0.0
      %453 = vmatmul.mubr.f32.gmra.mrb[0].mxu0 %v330
      %v454 = vpop.f32.mrb[0].mxu0
      %v455 = vadd.f32 0.0, %v454
      %v456 = vpop.f32.mrb[0].mxu0
      %457 = vmatprep.mubr.f32.mxu0 0.0
      %458 = vmatmul.mubr.f32.gmra.mrb[0].mxu0 %v333
      %v459 = vpop.f32.mrb[0].mxu0
      %v460 = vadd.f32 0.0, %v459
      %v461 = vpop.f32.mrb[0].mxu0
      %462 = vmatprep.mubr.f32.mxu0 0.0
      %463 = vmatmul.mubr.f32.gmra.mrb[0].mxu0 %v336
      %v464 = vpop.f32.mrb[0].mxu0
      %v465 = vadd.f32 0.0, %v464
      %v466 = vpop.f32.mrb[0].mxu0
      %467 = vmatprep.mubr.f32.mxu0 0.0
      %468 = vmatmul.mubr.f32.gmra.mrb[0].mxu0 %v339
      %v469 = vpop.f32.mrb[0].mxu0
      %v470 = vadd.f32 0.0, %v469
      %v471 = vpop.f32.mrb[0].mxu0
      %472 = vmatprep.mubr.f32.mxu0 0.0
      %473 = vmatmul.mubr.f32.gmra.mrb[0].mxu0 %v342
      %v474 = vpop.f32.mrb[0].mxu0
      %v475 = vadd.f32 0.0, %v474
      %v476 = vpop.f32.mrb[0].mxu0
      %477 = vmatprep.mubr.f32.mxu0 0.0
      %478 = vmatmul.mubr.f32.gmra.mrb[0].mxu0 %v345
      %v479 = vpop.f32.mrb[0].mxu0
      %v480 = vadd.f32 0.0, %v479
      %v481 = vpop.f32.mrb[0].mxu0
      %482 = vmatprep.mubr.f32.mxu0 0.0
      %483 = vmatmul.mubr.f32.gmra.mrb[0].mxu0 %v348
      %v484 = vpop.f32.mrb[0].mxu0
      %v485 = vadd.f32 0.0, %v484
      %v486 = vpop.f32.mrb[0].mxu0
      %487 = vmatprep.mubr.f32.mxu0 0.0
      %488 = vmatmul.mubr.f32.gmra.mrb[0].mxu0 %v351
      %v489 = vpop.f32.mrb[0].mxu0
      %v490 = vadd.f32 0.0, %v489
      %v491 = vpop.f32.mrb[0].mxu0
      %492 = vmatprep.mubr.f32.mxu0 0.0
      %493 = vmatmul.mubr.f32.gmra.mrb[0].mxu0 %v354
      %v494 = vpop.f32.mrb[0].mxu0
      %v495 = vadd.f32 0.0, %v494
      %v496 = vpop.f32.mrb[0].mxu0
      %497 = vmatprep.mubr.f32.mxu0 0.0
      %498 = vmatmul.mubr.f32.gmra.mrb[0].mxu0 %v357
      %v499 = vpop.f32.mrb[0].mxu0
      %v500 = vadd.f32 0.0, %v499
      %v501 = vpop.f32.mrb[0].mxu0
      %502 = vmatprep.mubr.f32.mxu0 0.0
      %503 = vmatmul.mubr.f32.gmra.mrb[0].mxu0 %v360
      %v504 = vpop.f32.mrb[0].mxu0
      %v505 = vadd.f32 0.0, %v504
      %v506 = vpop.f32.mrb[0].mxu0
      %507 = vmatprep.mubr.f32.mxu0 0.0
      %508 = vmatmul.mubr.f32.gmra.mrb[0].mxu0 %v363
      %v509 = vpop.f32.mrb[0].mxu0
      %v510 = vadd.f32 0.0, %v509
      %v511 = vpop.f32.mrb[0].mxu0
      %512 = vdwg.mxu0
      %v513 = vadd.f32 %v262, %v316
      %v514 = vadd.f32 %v265, %v316
      %v515 = vadd.f32 %v268, %v316
      %v516 = vadd.f32 %v271, %v316
      %v517 = vadd.f32 %v274, %v316
      %v518 = vadd.f32 %v277, %v316
      %v519 = vadd.f32 %v280, %v316
      %v520 = vadd.f32 %v283, %v316
      %v521 = vadd.f32 %v286, %v316
      %v522 = vadd.f32 %v289, %v316
      %v523 = vadd.f32 %v292, %v316
      %v524 = vadd.f32 %v295, %v316
      %v525 = vadd.f32 %v298, %v316
      %v526 = vadd.f32 %v301, %v316
      %v527 = vadd.f32 %v304, %v316
      %v528 = vadd.f32 %v307, %v316
      %v529 = vmul.f32 %v435, 2.0
      %v530 = vmul.f32 %v440, 2.0
      %v531 = vmul.f32 %v445, 2.0
      %v532 = vmul.f32 %v450, 2.0
      %v533 = vmul.f32 %v455, 2.0
      %v534 = vmul.f32 %v460, 2.0
      %v535 = vmul.f32 %v465, 2.0
      %v536 = vmul.f32 %v470, 2.0
      %v537 = vmul.f32 %v475, 2.0
      %v538 = vmul.f32 %v480, 2.0
      %v539 = vmul.f32 %v485, 2.0
      %v540 = vmul.f32 %v490, 2.0
      %v541 = vmul.f32 %v495, 2.0
      %v542 = vmul.f32 %v500, 2.0
      %v543 = vmul.f32 %v505, 2.0
      %v544 = vmul.f32 %v510, 2.0
      %v545 = vsub.f32 %v513, %v529
      %v546 = vsub.f32 %v514, %v530
      %v547 = vsub.f32 %v515, %v531
      %v548 = vsub.f32 %v516, %v532
      %v549 = vsub.f32 %v517, %v533
      %v550 = vsub.f32 %v518, %v534
      %v551 = vsub.f32 %v519, %v535
      %v552 = vsub.f32 %v520, %v536
      %v553 = vsub.f32 %v521, %v537
      %v554 = vsub.f32 %v522, %v538
      %v555 = vsub.f32 %v523, %v539
      %v556 = vsub.f32 %v524, %v540
      %v557 = vsub.f32 %v525, %v541
      %v558 = vsub.f32 %v526, %v542
      %v559 = vsub.f32 %v527, %v543
      %v560 = vsub.f32 %v528, %v544
      %v561 = vmax.f32 %v545, 0.0
      %v562 = vmax.f32 %v546, 0.0
      %v563 = vmax.f32 %v547, 0.0
      %v564 = vmax.f32 %v548, 0.0
      %v565 = vmax.f32 %v549, 0.0
      %v566 = vmax.f32 %v550, 0.0
      %v567 = vmax.f32 %v551, 0.0
      %v568 = vmax.f32 %v552, 0.0
      %v569 = vmax.f32 %v553, 0.0
      %v570 = vmax.f32 %v554, 0.0
      %v571 = vmax.f32 %v555, 0.0
      %v572 = vmax.f32 %v556, 0.0
      %v573 = vmax.f32 %v557, 0.0
      %v574 = vmax.f32 %v558, 0.0
      %v575 = vmax.f32 %v559, 0.0
      %v576 = vmax.f32 %v560, 0.0
      %s577 = smul.u32 %s20, 128
      %v578 = vlaneseq
      %v579 = vand.u32 %v578, 127
      %v580 = vstv %s577
      %v581 = vadd.s32 %v580, %v579
      %vm582 = vcmp.lt.s32.totalorder %v581, 16
      %v583 = vsel %vm582, %v561, 1e+30
      %v584 = vsel %vm582, %v562, 1e+30
      %v585 = vsel %vm582, %v563, 1e+30
      %v586 = vsel %vm582, %v564, 1e+30
      %v587 = vsel %vm582, %v565, 1e+30
      %v588 = vsel %vm582, %v566, 1e+30
      %v589 = vsel %vm582, %v567, 1e+30
      %v590 = vsel %vm582, %v568, 1e+30
      %v591 = vsel %vm582, %v569, 1e+30
      %v592 = vsel %vm582, %v570, 1e+30
      %v593 = vsel %vm582, %v571, 1e+30
      %v594 = vsel %vm582, %v572, 1e+30
      %v595 = vsel %vm582, %v573, 1e+30
      %v596 = vsel %vm582, %v574, 1e+30
      %v597 = vsel %vm582, %v575, 1e+30
      %v598 = vsel %vm582, %v576, 1e+30
      %599 = vst [vmem:[%s224] sm:$0xff] %v583
      %600 = vst [vmem:[%s224 + $0x8] sm:$0xff] %v584
      %601 = vst [vmem:[%s224 + $0x10] sm:$0xff] %v585
      %602 = vst [vmem:[%s224 + $0x18] sm:$0xff] %v586
      %603 = vst [vmem:[%s224 + $0x20] sm:$0xff] %v587
      %604 = vst [vmem:[%s224 + $0x28] sm:$0xff] %v588
      %605 = vst [vmem:[%s224 + $0x30] sm:$0xff] %v589
      %606 = vst [vmem:[%s224 + $0x38] sm:$0xff] %v590
      %607 = vst [vmem:[%s224 + $0x40] sm:$0xff] %v591
      %608 = vst [vmem:[%s224 + $0x48] sm:$0xff] %v592
      %609 = vst [vmem:[%s224 + $0x50] sm:$0xff] %v593
      %610 = vst [vmem:[%s224 + $0x58] sm:$0xff] %v594
      %611 = vst [vmem:[%s224 + $0x60] sm:$0xff] %v595
      %612 = vst [vmem:[%s224 + $0x68] sm:$0xff] %v596
      %613 = vst [vmem:[%s224 + $0x70] sm:$0xff] %v597
      %614 = vst [vmem:[%s224 + $0x78] sm:$0xff] %v598
      %s615 = smul.u32 16, %s19
      %p616 = scmp.lt.s32.totalorder %s18, 1
      %s617 = scalar_select %p616, %s18, 1
      %p618 = scmp.lt.s32.totalorder %s615, 15
      %s619 = scalar_select %p618, %s615, 15
      %p620 = scmp.lt.s32.totalorder %s20, 0
      %s621 = scalar_select %p620, %s20, 0
      %s622 = sadd.s32 %s621, %s619
      %s623 = smul.addr %s617, 16
      %s624 = sadd.s32 %s622, %s623
      %s625 = smul.addr %s624, 8
      %s626 = scalar_lea.vmem %s2, %s625
      // Predicated region
      $region29: #{dgcnn_forward.9} parent=27 // pred_check
        %p627 = pneg %p110
      $region30: #{dgcnn_forward.9} parent=27 // pred_check_branch
        %629 = sbr.rel (%p627) target = $region32
      $region31: #{dgcnn_forward.9} parent=27 // pred_region
        %s630 = smul.u32 16, %s19
      $region32: #{dgcnn_forward.9} parent=27 // pred_fallthru
        _
    $region28: #{dgcnn_forward.9} parent=5 // pred_fallthru
      _
    %p631 = scmp.le.s32.totalorder 2, %s8
    // Predicated region
    $region33: #{dgcnn_forward.9} parent=5 // pred_check
      %p632 = pneg %p631
    $region34: #{dgcnn_forward.9} parent=5 // pred_check_branch
      %634 = sbr.rel (%p632) target = $region36
    $region35: #{dgcnn_forward.9} parent=5 // pred_region
      %s635 = ssub.s32 %s8, 2
      // Predicated region
      $region37: #{dgcnn_forward.9} parent=35 // pred_check
        %p636 = pneg %p116
      $region38: #{dgcnn_forward.9} parent=35 // pred_check_branch
        %638 = sbr.rel (%p636) target = $region40
      $region39: #{dgcnn_forward.9} parent=35 // pred_region
        %s639 = smul.u32 16, %s22
        %p640 = scmp.lt.s32.totalorder %s21, 1
        %s641 = scalar_select %p640, %s21, 1
        %p642 = scmp.lt.s32.totalorder %s639, 15
        %s643 = scalar_select %p642, %s639, 15
        %p644 = scmp.lt.s32.totalorder %s23, 0
        %s645 = scalar_select %p644, %s23, 0
        %s646 = sadd.s32 %s645, %s643
        %s647 = smul.addr %s641, 16
        %s648 = sadd.s32 %s646, %s647
        %s649 = smul.addr %s648, 8
        %s650 = scalar_lea.vmem %s2, %s649
      $region40: #{dgcnn_forward.9} parent=35 // pred_fallthru
        _
    $region36: #{dgcnn_forward.9} parent=5 // pred_fallthru
      _
  $region6: #{dgcnn_forward.9} parent=0 // loop_footer
    %s12 = sadd.s32 1, %s8
  $region7: #{dgcnn_forward.9} parent=0 // loop_footer_branch
    %7 = sbr.rel target = $region3
  $region8: #{dgcnn_forward.9} parent=0 // loop_exit
    _

// kernel: dgcnn_forward.11
$region0: #{dgcnn_forward.11}
  #allocation0 [shape = 'u32[]', space=smem, size = 0x4, offset = 0x4, fixed_abs, tag = 'smem constant byte address 0x4 - core index']
  #allocation1 [shape = 'u32[144,128]{1,0:T(1,128)}', space=vmem, size = 0x12000, scoped, tag = 'internal scratch']
  %s0 = inlined_call_operand.vmem [shape: bf16[32,128], index: 0, kind: input, shape index: {}]
  %s1 = inlined_call_operand.vmem [shape: bf16[4,32,128], index: 1, kind: input, shape index: {}]
  %s2 = inlined_call_operand.vmem [shape: f32[1,8,128], index: 2, kind: output, shape index: {0}]
  %s3 = inlined_call_operand.vmem [shape: f32[1,8,128], index: 3, kind: output, shape index: {1}]
  %4 = xla_tuple %s2, %s3
  %s5 = sld [smem:[#allocation0]]
  $region57: #{dgcnn_forward.11} parent=0
    _
  %s7 = ssub.s32 1, %s5
  %s8 = scalar_select 0, %s7, %s5
  loop: start=0, step=1, limit=6
  $region2: #{dgcnn_forward.11} parent=0 // loop_pre_header
    _
  $region3: #{dgcnn_forward.11} parent=0 // loop_header
    %s10 = sphi 0, %s14
    %p11 = scmp.ge.s32.totalorder %s10, 6
    %s17 = sphi 0, %s29
    %s18 = sphi 0, %s25
    %s19 = sphi 0, %s17
    %s20 = sphi 0, %s18
    %s21 = sphi 0, %s19
    %s22 = sphi 0, %s20
    %s32 = sphi 0, %s34
    %s35 = sphi 0, %s32
    %s36 = sphi 0, %s35
    %s52 = sphi 0, %s36
    %s60 = sphi 0, %s62
    %s63 = sphi 0, %s60
    %s64 = sphi 0, %s63
    %s80 = sphi 0, %s64
    %s86 = sphi 0, %s88
    %s89 = sphi 0, %s86
    %s90 = sphi 0, %s89
    %s106 = sphi 0, %s90
    %s112 = sphi 0, %s114
    %s115 = sphi 0, %s112
    %s116 = sphi 0, %s115
    %s132 = sphi 0, %s116
  $region4: #{dgcnn_forward.11} parent=0 // loop_header_branch
    %13 = sbr.rel (%p11) target = $region8
  $region5: #{dgcnn_forward.11} parent=0 // loop_body
    %s15 = ssub.s32 %s10, 1
    %s16 = ssub.s32 %s10, 2
    %s23 = sadd.s32 1, %s18
    %p24 = scmp.ge.s32.totalorder %s23, 4
    %s25 = scalar_select %p24, 0, %s23
    %s26 = sadd.s32 1, %s17
    %s27 = scalar_select %p24, %s26, %s17
    %p28 = scmp.ge.s32.totalorder %s27, 1
    %s29 = scalar_select %p28, 0, %s27
    %s30 = ssub.s32 %s17, %s29
    %p31 = scmp.eq.s32.totalorder %s30, 0
    %s33 = sadd.s32 %s32, 1
    %s34 = scalar_select %p31, %s32, %s33
    %p37 = pneg %p31
    %p38 = scmp.eq.s32.totalorder %s10, 3
    %p39 = por %p37, %p38
    %p40 = scmp.ne.s32.totalorder %s32, %s35
    %p41 = scmp.eq.s32.totalorder %s10, 0
    %p42 = por %p40, %p41
    %p43 = scmp.ne.s32.totalorder %s32, %s35
    %p44 = scmp.eq.s32.totalorder %s15, 3
    %p45 = por %p43, %p44
    %p46 = scmp.ne.s32.totalorder %s35, %s36
    %p47 = scmp.eq.s32.totalorder %s15, 0
    %p48 = por %p46, %p47
    %p49 = scmp.ne.s32.totalorder %s35, %s36
    %p50 = scmp.eq.s32.totalorder %s16, 3
    %p51 = por %p49, %p50
    %p53 = scmp.ne.s32.totalorder %s36, %s52
    %p54 = scmp.eq.s32.totalorder %s16, 0
    %p55 = por %p53, %p54
    %s56 = ssub.s32 %s18, %s25
    %s57 = ssub.s32 %s17, %s29
    %s58 = sor.u32 %s56, %s57
    %p59 = scmp.eq.s32.totalorder %s58, 0
    %s61 = sadd.s32 %s60, 1
    %s62 = scalar_select %p59, %s60, %s61
    %p65 = pneg %p59
    %p66 = scmp.eq.s32.totalorder %s10, 3
    %p67 = por %p65, %p66
    %p68 = scmp.ne.s32.totalorder %s60, %s63
    %p69 = scmp.eq.s32.totalorder %s10, 0
    %p70 = por %p68, %p69
    %p71 = scmp.ne.s32.totalorder %s60, %s63
    %p72 = scmp.eq.s32.totalorder %s15, 3
    %p73 = por %p71, %p72
    %p74 = scmp.ne.s32.totalorder %s63, %s64
    %p75 = scmp.eq.s32.totalorder %s15, 0
    %p76 = por %p74, %p75
    %p77 = scmp.ne.s32.totalorder %s63, %s64
    %p78 = scmp.eq.s32.totalorder %s16, 3
    %p79 = por %p77, %p78
    %p81 = scmp.ne.s32.totalorder %s64, %s80
    %p82 = scmp.eq.s32.totalorder %s16, 0
    %p83 = por %p81, %p82
    %s84 = ssub.s32 %s17, %s29
    %p85 = scmp.eq.s32.totalorder %s84, 0
    %s87 = sadd.s32 %s86, 1
    %s88 = scalar_select %p85, %s86, %s87
    %p91 = pneg %p85
    %p92 = scmp.eq.s32.totalorder %s10, 3
    %p93 = por %p91, %p92
    %p94 = scmp.ne.s32.totalorder %s86, %s89
    %p95 = scmp.eq.s32.totalorder %s10, 0
    %p96 = por %p94, %p95
    %p97 = scmp.ne.s32.totalorder %s86, %s89
    %p98 = scmp.eq.s32.totalorder %s15, 3
    %p99 = por %p97, %p98
    %p100 = scmp.ne.s32.totalorder %s89, %s90
    %p101 = scmp.eq.s32.totalorder %s15, 0
    %p102 = por %p100, %p101
    %p103 = scmp.ne.s32.totalorder %s89, %s90
    %p104 = scmp.eq.s32.totalorder %s16, 3
    %p105 = por %p103, %p104
    %p107 = scmp.ne.s32.totalorder %s90, %s106
    %p108 = scmp.eq.s32.totalorder %s16, 0
    %p109 = por %p107, %p108
    %s110 = ssub.s32 %s17, %s29
    %p111 = scmp.eq.s32.totalorder %s110, 0
    %s113 = sadd.s32 %s112, 1
    %s114 = scalar_select %p111, %s112, %s113
    %p117 = pneg %p111
    %p118 = scmp.eq.s32.totalorder %s10, 3
    %p119 = por %p117, %p118
    %p120 = scmp.ne.s32.totalorder %s112, %s115
    %p121 = scmp.eq.s32.totalorder %s10, 0
    %p122 = por %p120, %p121
    %p123 = scmp.ne.s32.totalorder %s112, %s115
    %p124 = scmp.eq.s32.totalorder %s15, 3
    %p125 = por %p123, %p124
    %p126 = scmp.ne.s32.totalorder %s115, %s116
    %p127 = scmp.eq.s32.totalorder %s15, 0
    %p128 = por %p126, %p127
    %p129 = scmp.ne.s32.totalorder %s115, %s116
    %p130 = scmp.eq.s32.totalorder %s16, 3
    %p131 = por %p129, %p130
    %p133 = scmp.ne.s32.totalorder %s116, %s132
    %p134 = scmp.eq.s32.totalorder %s16, 0
    %p135 = por %p133, %p134
    %p136 = scmp.le.s32.totalorder 1, %s10
    %p137 = scmp.lt.s32.totalorder %s10, 5
    %p138 = pnand %p136, %p137
    %p139 = pneg %p138
    // Predicated region
    $region9: #{dgcnn_forward.11} parent=5 // pred_check
      _
    $region10: #{dgcnn_forward.11} parent=5 // pred_check_branch
      %141 = sbr.rel (%p138) target = $region12
    $region11: #{dgcnn_forward.11} parent=5 // pred_region
      %s142 = ssub.s32 %s10, 1
      // Predicated region
      $region13: #{dgcnn_forward.11} parent=11 // pred_check
        %p143 = pneg %p48
      $region14: #{dgcnn_forward.11} parent=11 // pred_check_branch
        %145 = sbr.rel (%p143) target = $region16
      $region15: #{dgcnn_forward.11} parent=11 // pred_region
        %s146 = smul.u32 4, %s19
        %p147 = scmp.lt.s32.totalorder %s146, 3
        %s148 = scalar_select %p147, %s146, 3
        %s149 = smul.addr %s148, 4
        %s150 = scalar_lea.vmem %s0, %s149
        %s151 = smul.u32 4, %s19
      $region16: #{dgcnn_forward.11} parent=11 // pred_fallthru
        _
    $region12: #{dgcnn_forward.11} parent=5 // pred_fallthru
      _
    %p152 = scmp.lt.s32.totalorder %s10, 4
    // Predicated region
    $region17: #{dgcnn_forward.11} parent=5 // pred_check
      %p153 = pneg %p152
    $region18: #{dgcnn_forward.11} parent=5 // pred_check_branch
      %155 = sbr.rel (%p153) target = $region20
    $region19: #{dgcnn_forward.11} parent=5 // pred_region
      // Predicated region
      $region21: #{dgcnn_forward.11} parent=19 // pred_check
        %p156 = pneg %p70
      $region22: #{dgcnn_forward.11} parent=19 // pred_check_branch
        %158 = sbr.rel (%p156) target = $region24
      $region23: #{dgcnn_forward.11} parent=19 // pred_region
        %s159 = smul.u32 4, %s17
        %p160 = scmp.lt.s32.totalorder %s18, 3
        %s161 = scalar_select %p160, %s18, 3
        %p162 = scmp.lt.s32.totalorder %s159, 3
        %s163 = scalar_select %p162, %s159, 3
        %s164 = smul.addr %s161, 4
        %s165 = sadd.s32 %s163, %s164
        %s166 = smul.addr %s165, 4
        %s167 = scalar_lea.vmem %s1, %s166
        %s168 = smul.u32 4, %s17
      $region24: #{dgcnn_forward.11} parent=19 // pred_fallthru
        _
    $region20: #{dgcnn_forward.11} parent=5 // pred_fallthru
      _
    %p169 = scmp.le.s32.totalorder 1, %s10
    %p170 = scmp.lt.s32.totalorder %s10, 5
    %p171 = pnand %p169, %p170
    %p172 = pneg %p171
    // Predicated region
    $region25: #{dgcnn_forward.11} parent=5 // pred_check
      _
    $region26: #{dgcnn_forward.11} parent=5 // pred_check_branch
      %174 = sbr.rel (%p171) target = $region28
    $region27: #{dgcnn_forward.11} parent=5 // pred_region
      %s175 = ssub.s32 %s10, 1
      %s176 = smul.u32 4, %s19
      %p177 = scmp.lt.s32.totalorder %s176, 3
      %s178 = scalar_select %p177, %s176, 3
      %s179 = smul.addr %s178, 4
      %s180 = scalar_lea.vmem %s0, %s179
      %p181 = pneg %p48
      %p182 = pneg %p45
      %s183 = smul.u32 4, %s19
      %p184 = scmp.lt.s32.totalorder %s20, 3
      %s185 = scalar_select %p184, %s20, 3
      %p186 = scmp.lt.s32.totalorder %s183, 3
      %s187 = scalar_select %p186, %s183, 3
      %s188 = smul.addr %s185, 4
      %s189 = sadd.s32 %s187, %s188
      %s190 = smul.addr %s189, 4
      %s191 = scalar_lea.vmem %s1, %s190
      %p192 = pneg %p76
      %p193 = pneg %p73
      %p194 = pneg %p102
      %p195 = pneg %p99
      %p196 = scmp.lt.s32.totalorder %s19, 0
      %s197 = scalar_select %p196, %s19, 0
      %s198 = smul.addr %s197, 8
      %s199 = scalar_lea.vmem %s2, %s198
      %p200 = pneg %p128
      %p201 = pneg %p125
      %p202 = scmp.lt.s32.totalorder %s19, 0
      %s203 = scalar_select %p202, %s19, 0
      %s204 = smul.addr %s203, 8
      %s205 = scalar_lea.vmem %s3, %s204
      %s206 = smul.u32 4, %s19
      %p207 = scmp.lt.s32.totalorder %s206, 3
      %s208 = scalar_select %p207, %s206, 3
      %s209 = smul.addr %s208, 4
      %s210 = scalar_lea.vmem %s0, %s209
      %s211 = smul.u32 4, %s19
      %s212 = smul.u32 4, %s19
      %p213 = scmp.lt.s32.totalorder %s20, 3
      %s214 = scalar_select %p213, %s20, 3
      %p215 = scmp.lt.s32.totalorder %s212, 3
      %s216 = scalar_select %p215, %s212, 3
      %s217 = smul.addr %s214, 4
      %s218 = sadd.s32 %s216, %s217
      %s219 = smul.addr %s218, 4
      %s220 = scalar_lea.vmem %s1, %s219
      %s221 = smul.u32 4, %s19
      %p222 = scmp.lt.s32.totalorder %s19, 0
      %s223 = scalar_select %p222, %s19, 0
      %s224 = smul.addr %s223, 8
      %s225 = scalar_lea.vmem %s2, %s224
      %p226 = scmp.lt.s32.totalorder %s19, 0
      %s227 = scalar_select %p226, %s19, 0
      %s228 = smul.addr %s227, 8
      %s229 = scalar_lea.vmem %s3, %s228
      %v230 = vld [vmem:[%s210] sm:$0xf]
      %v231 = vld [vmem:[%s210 + $0x4] sm:$0xf]
      %v232 = vld [vmem:[%s210 + $0x8] sm:$0xf]
      %v233 = vld [vmem:[%s210 + $0xc] sm:$0xf]
      %v234 = vunpack.c.l.bf16 %v230
      %v235 = vunpack.c.l.bf16 %v231
      %v236 = vunpack.c.l.bf16 %v232
      %v237 = vunpack.c.l.bf16 %v233
      %v238 = vld [vmem:[%s220] sm:$0xf]
      %v239 = vld [vmem:[%s220 + $0x4] sm:$0xf]
      %v240 = vld [vmem:[%s220 + $0x8] sm:$0xf]
      %v241 = vld [vmem:[%s220 + $0xc] sm:$0xf]
      %v242 = vunpack.c.l.bf16 %v238
      %v243 = vunpack.c.l.bf16 %v239
      %v244 = vunpack.c.l.bf16 %v240
      %v245 = vunpack.c.l.bf16 %v241
      %v246 = vadd.f32 %v234, %v242
      %v247 = vadd.f32 %v235, %v243
      %v248 = vadd.f32 %v236, %v244
      %v249 = vadd.f32 %v237, %v245
      %v250 = vadd.f32 %v246, %v247
      %v251 = vadd.f32 %v250, %v248
      %v252 = vadd.f32 %v251, %v249
      %v253 = vrot.slane %v252, 4
      %v254 = vadd.f32 %v252, %v253
      %v255 = vrot.slane %v254, 2
      %v256 = vadd.f32 %v254, %v255
      %v257 = vrot.slane %v256, 1
      %v258 = vadd.f32 %v256, %v257
      %v259 = vlaneseq
      %v260 = vshrl.u32 %v259, 7
      %vm261 = vcmp.eq.s32.totalorder %v260, 0
      %v262 = vsel %vm261, %v258, 0.0
      %v263 = vmul.f32 %v246, %v246
      %v264 = vmul.f32 %v247, %v247
      %v265 = vmul.f32 %v248, %v248
      %v266 = vmul.f32 %v249, %v249
      %v267 = vadd.f32 %v263, %v264
      %v268 = vadd.f32 %v267, %v265
      %v269 = vadd.f32 %v268, %v266
      %v270 = vrot.slane %v269, 4
      %v271 = vadd.f32 %v269, %v270
      %v272 = vrot.slane %v271, 2
      %v273 = vadd.f32 %v271, %v272
      %v274 = vrot.slane %v273, 1
      %v275 = vadd.f32 %v273, %v274
      %v276 = vsel %vm261, %v275, 0.0
      %p277 = scmp.eq.s32.totalorder %s20, 0
      // Predicated region
      $region29: #{dgcnn_forward.11} parent=27 // pred_check
        %p278 = pneg %p277
      $region30: #{dgcnn_forward.11} parent=27 // pred_check_branch
        %280 = sbr.rel (%p278) target = $region32
      $region31: #{dgcnn_forward.11} parent=27 // pred_region
        %281 = vst [vmem:[%s225] sm:$0xff] %v262
        %282 = vst [vmem:[%s229] sm:$0xff] %v276
      $region32: #{dgcnn_forward.11} parent=27 // pred_fallthru
        _
      %p283 = scmp.gt.s32.totalorder %s20, 0
      // Predicated region
      $region33: #{dgcnn_forward.11} parent=27 // pred_check
        %p284 = pneg %p283
      $region34: #{dgcnn_forward.11} parent=27 // pred_check_branch
        %286 = sbr.rel (%p284) target = $region36
      $region35: #{dgcnn_forward.11} parent=27 // pred_region
        %v287 = vld [vmem:[%s225] sm:$0xff]
        %v288 = vadd.f32 %v287, %v262
        %289 = vst [vmem:[%s225] sm:$0xff] %v288
        %v290 = vld [vmem:[%s229] sm:$0xff]
        %v291 = vadd.f32 %v290, %v276
        %292 = vst [vmem:[%s229] sm:$0xff] %v291
      $region36: #{dgcnn_forward.11} parent=27 // pred_fallthru
        _
      %p293 = scmp.lt.s32.totalorder %s19, 0
      %s294 = scalar_select %p293, %s19, 0
      %s295 = smul.addr %s294, 8
      %s296 = scalar_lea.vmem %s2, %s295
      %p297 = scmp.lt.s32.totalorder %s19, 0
      %s298 = scalar_select %p297, %s19, 0
      %s299 = smul.addr %s298, 8
      %s300 = scalar_lea.vmem %s3, %s299
      // Predicated region
      $region37: #{dgcnn_forward.11} parent=27 // pred_check
        %p301 = pneg %p99
      $region38: #{dgcnn_forward.11} parent=27 // pred_check_branch
        %303 = sbr.rel (%p301) target = $region40
      $region39: #{dgcnn_forward.11} parent=27 // pred_region
        _
      $region40: #{dgcnn_forward.11} parent=27 // pred_fallthru
        _
      // Predicated region
      $region41: #{dgcnn_forward.11} parent=27 // pred_check
        %p304 = pneg %p125
      $region42: #{dgcnn_forward.11} parent=27 // pred_check_branch
        %306 = sbr.rel (%p304) target = $region44
      $region43: #{dgcnn_forward.11} parent=27 // pred_region
        _
      $region44: #{dgcnn_forward.11} parent=27 // pred_fallthru
        _
      // Predicated region
      $region45: #{dgcnn_forward.11} parent=27 // pred_check
        %p307 = pneg %p99
      $region46: #{dgcnn_forward.11} parent=27 // pred_check_branch
        %309 = sbr.rel (%p307) target = $region48
      $region47: #{dgcnn_forward.11} parent=27 // pred_region
        %p310 = scmp.lt.s32.totalorder %s19, 0
        %s311 = scalar_select %p310, %s19, 0
        %s312 = smul.addr %s311, 8
        %s313 = scalar_lea.vmem %s2, %s312
      $region48: #{dgcnn_forward.11} parent=27 // pred_fallthru
        _
      // Predicated region
      $region49: #{dgcnn_forward.11} parent=27 // pred_check
        %p314 = pneg %p125
      $region50: #{dgcnn_forward.11} parent=27 // pred_check_branch
        %316 = sbr.rel (%p314) target = $region52
      $region51: #{dgcnn_forward.11} parent=27 // pred_region
        %p317 = scmp.lt.s32.totalorder %s19, 0
        %s318 = scalar_select %p317, %s19, 0
        %s319 = smul.addr %s318, 8
        %s320 = scalar_lea.vmem %s3, %s319
      $region52: #{dgcnn_forward.11} parent=27 // pred_fallthru
        _
    $region28: #{dgcnn_forward.11} parent=5 // pred_fallthru
      _
    %p321 = scmp.le.s32.totalorder 2, %s10
    // Predicated region
    $region53: #{dgcnn_forward.11} parent=5 // pred_check
      %p322 = pneg %p321
    $region54: #{dgcnn_forward.11} parent=5 // pred_check_branch
      %324 = sbr.rel (%p322) target = $region56
    $region55: #{dgcnn_forward.11} parent=5 // pred_region
      %s325 = ssub.s32 %s10, 2
    $region56: #{dgcnn_forward.11} parent=5 // pred_fallthru
      _
  $region6: #{dgcnn_forward.11} parent=0 // loop_footer
    %s14 = sadd.s32 1, %s10
  $region7: #{dgcnn_forward.11} parent=0 // loop_footer_branch
    %9 = sbr.rel target = $region3
  $region8: #{dgcnn_forward.11} parent=0 // loop_exit
    _

// kernel: dgcnn_forward.12
$region0: #{dgcnn_forward.12}
  #allocation0 [shape = 'u32[]', space=smem, size = 0x4, offset = 0x4, fixed_abs, tag = 'smem constant byte address 0x4 - core index']
  #allocation1 [shape = 'u32[144,128]{1,0:T(1,128)}', space=vmem, size = 0x12000, scoped, tag = 'internal scratch']
  %s0 = inlined_call_operand.vmem [shape: bf16[32,128], index: 0, kind: input, shape index: {}]
  %s1 = inlined_call_operand.vmem [shape: bf16[4,32,128], index: 1, kind: input, shape index: {}]
  %s2 = inlined_call_operand.vmem [shape: f32[1,128], index: 2, kind: input, shape index: {}]
  %s3 = inlined_call_operand.vmem [shape: f32[1,128], index: 3, kind: input, shape index: {}]
  %s4 = inlined_call_operand.vmem [shape: bf16[32,128], index: 4, kind: output, shape index: {}]
  %s5 = sld [smem:[#allocation0]]
  $region57: #{dgcnn_forward.12} parent=0
    _
  %s7 = ssub.s32 1, %s5
  %s8 = scalar_select 0, %s7, %s5
  loop: start=0, step=1, limit=6
  $region2: #{dgcnn_forward.12} parent=0 // loop_pre_header
    _
  $region3: #{dgcnn_forward.12} parent=0 // loop_header
    %s10 = sphi 0, %s14
    %p11 = scmp.ge.s32.totalorder %s10, 6
    %s17 = sphi 0, %s29
    %s18 = sphi 0, %s25
    %s19 = sphi 0, %s17
    %s20 = sphi 0, %s18
    %s21 = sphi 0, %s19
    %s22 = sphi 0, %s20
    %s32 = sphi 0, %s34
    %s35 = sphi 0, %s32
    %s36 = sphi 0, %s35
    %s52 = sphi 0, %s36
    %s60 = sphi 0, %s62
    %s63 = sphi 0, %s60
    %s64 = sphi 0, %s63
    %s80 = sphi 0, %s64
    %s84 = sphi 0, %s84
    %s86 = sphi 0, %s84
    %s87 = sphi 0, %s86
    %s101 = sphi 0, %s87
    %s105 = sphi 0, %s105
    %s107 = sphi 0, %s105
    %s108 = sphi 0, %s107
    %s122 = sphi 0, %s108
    %s128 = sphi 0, %s130
    %s131 = sphi 0, %s128
    %s132 = sphi 0, %s131
    %s148 = sphi 0, %s132
  $region4: #{dgcnn_forward.12} parent=0 // loop_header_branch
    %13 = sbr.rel (%p11) target = $region8
  $region5: #{dgcnn_forward.12} parent=0 // loop_body
    %s15 = ssub.s32 %s10, 1
    %s16 = ssub.s32 %s10, 2
    %s23 = sadd.s32 1, %s18
    %p24 = scmp.ge.s32.totalorder %s23, 4
    %s25 = scalar_select %p24, 0, %s23
    %s26 = sadd.s32 1, %s17
    %s27 = scalar_select %p24, %s26, %s17
    %p28 = scmp.ge.s32.totalorder %s27, 1
    %s29 = scalar_select %p28, 0, %s27
    %s30 = ssub.s32 %s17, %s29
    %p31 = scmp.eq.s32.totalorder %s30, 0
    %s33 = sadd.s32 %s32, 1
    %s34 = scalar_select %p31, %s32, %s33
    %p37 = pneg %p31
    %p38 = scmp.eq.s32.totalorder %s10, 3
    %p39 = por %p37, %p38
    %p40 = scmp.ne.s32.totalorder %s32, %s35
    %p41 = scmp.eq.s32.totalorder %s10, 0
    %p42 = por %p40, %p41
    %p43 = scmp.ne.s32.totalorder %s32, %s35
    %p44 = scmp.eq.s32.totalorder %s15, 3
    %p45 = por %p43, %p44
    %p46 = scmp.ne.s32.totalorder %s35, %s36
    %p47 = scmp.eq.s32.totalorder %s15, 0
    %p48 = por %p46, %p47
    %p49 = scmp.ne.s32.totalorder %s35, %s36
    %p50 = scmp.eq.s32.totalorder %s16, 3
    %p51 = por %p49, %p50
    %p53 = scmp.ne.s32.totalorder %s36, %s52
    %p54 = scmp.eq.s32.totalorder %s16, 0
    %p55 = por %p53, %p54
    %s56 = ssub.s32 %s18, %s25
    %s57 = ssub.s32 %s17, %s29
    %s58 = sor.u32 %s56, %s57
    %p59 = scmp.eq.s32.totalorder %s58, 0
    %s61 = sadd.s32 %s60, 1
    %s62 = scalar_select %p59, %s60, %s61
    %p65 = pneg %p59
    %p66 = scmp.eq.s32.totalorder %s10, 3
    %p67 = por %p65, %p66
    %p68 = scmp.ne.s32.totalorder %s60, %s63
    %p69 = scmp.eq.s32.totalorder %s10, 0
    %p70 = por %p68, %p69
    %p71 = scmp.ne.s32.totalorder %s60, %s63
    %p72 = scmp.eq.s32.totalorder %s15, 3
    %p73 = por %p71, %p72
    %p74 = scmp.ne.s32.totalorder %s63, %s64
    %p75 = scmp.eq.s32.totalorder %s15, 0
    %p76 = por %p74, %p75
    %p77 = scmp.ne.s32.totalorder %s63, %s64
    %p78 = scmp.eq.s32.totalorder %s16, 3
    %p79 = por %p77, %p78
    %p81 = scmp.ne.s32.totalorder %s64, %s80
    %p82 = scmp.eq.s32.totalorder %s16, 0
    %p83 = por %p81, %p82
    %s85 = sadd.s32 %s84, 1
    %p88 = scmp.eq.s32.totalorder %s10, 3
    %p89 = scmp.ne.s32.totalorder %s84, %s86
    %p90 = scmp.eq.s32.totalorder %s10, 0
    %p91 = por %p89, %p90
    %p92 = scmp.ne.s32.totalorder %s84, %s86
    %p93 = scmp.eq.s32.totalorder %s15, 3
    %p94 = por %p92, %p93
    %p95 = scmp.ne.s32.totalorder %s86, %s87
    %p96 = scmp.eq.s32.totalorder %s15, 0
    %p97 = por %p95, %p96
    %p98 = scmp.ne.s32.totalorder %s86, %s87
    %p99 = scmp.eq.s32.totalorder %s16, 3
    %p100 = por %p98, %p99
    %p102 = scmp.ne.s32.totalorder %s87, %s101
    %p103 = scmp.eq.s32.totalorder %s16, 0
    %p104 = por %p102, %p103
    %s106 = sadd.s32 %s105, 1
    %p109 = scmp.eq.s32.totalorder %s10, 3
    %p110 = scmp.ne.s32.totalorder %s105, %s107
    %p111 = scmp.eq.s32.totalorder %s10, 0
    %p112 = por %p110, %p111
    %p113 = scmp.ne.s32.totalorder %s105, %s107
    %p114 = scmp.eq.s32.totalorder %s15, 3
    %p115 = por %p113, %p114
    %p116 = scmp.ne.s32.totalorder %s107, %s108
    %p117 = scmp.eq.s32.totalorder %s15, 0
    %p118 = por %p116, %p117
    %p119 = scmp.ne.s32.totalorder %s107, %s108
    %p120 = scmp.eq.s32.totalorder %s16, 3
    %p121 = por %p119, %p120
    %p123 = scmp.ne.s32.totalorder %s108, %s122
    %p124 = scmp.eq.s32.totalorder %s16, 0
    %p125 = por %p123, %p124
    %s126 = ssub.s32 %s17, %s29
    %p127 = scmp.eq.s32.totalorder %s126, 0
    %s129 = sadd.s32 %s128, 1
    %s130 = scalar_select %p127, %s128, %s129
    %p133 = pneg %p127
    %p134 = scmp.eq.s32.totalorder %s10, 3
    %p135 = por %p133, %p134
    %p136 = scmp.ne.s32.totalorder %s128, %s131
    %p137 = scmp.eq.s32.totalorder %s10, 0
    %p138 = por %p136, %p137
    %p139 = scmp.ne.s32.totalorder %s128, %s131
    %p140 = scmp.eq.s32.totalorder %s15, 3
    %p141 = por %p139, %p140
    %p142 = scmp.ne.s32.totalorder %s131, %s132
    %p143 = scmp.eq.s32.totalorder %s15, 0
    %p144 = por %p142, %p143
    %p145 = scmp.ne.s32.totalorder %s131, %s132
    %p146 = scmp.eq.s32.totalorder %s16, 3
    %p147 = por %p145, %p146
    %p149 = scmp.ne.s32.totalorder %s132, %s148
    %p150 = scmp.eq.s32.totalorder %s16, 0
    %p151 = por %p149, %p150
    %p152 = scmp.le.s32.totalorder 1, %s10
    %p153 = scmp.lt.s32.totalorder %s10, 5
    %p154 = pnand %p152, %p153
    %p155 = pneg %p154
    // Predicated region
    $region9: #{dgcnn_forward.12} parent=5 // pred_check
      _
    $region10: #{dgcnn_forward.12} parent=5 // pred_check_branch
      %157 = sbr.rel (%p154) target = $region12
    $region11: #{dgcnn_forward.12} parent=5 // pred_region
      %s158 = ssub.s32 %s10, 1
      // Predicated region
      $region13: #{dgcnn_forward.12} parent=11 // pred_check
        %p159 = pneg %p48
      $region14: #{dgcnn_forward.12} parent=11 // pred_check_branch
        %161 = sbr.rel (%p159) target = $region16
      $region15: #{dgcnn_forward.12} parent=11 // pred_region
        %s162 = smul.u32 4, %s19
        %p163 = scmp.lt.s32.totalorder %s162, 3
        %s164 = scalar_select %p163, %s162, 3
        %s165 = smul.addr %s164, 4
        %s166 = scalar_lea.vmem %s0, %s165
        %s167 = smul.u32 4, %s19
      $region16: #{dgcnn_forward.12} parent=11 // pred_fallthru
        _
      // Predicated region
      $region17: #{dgcnn_forward.12} parent=11 // pred_check
        %p168 = pneg %p97
      $region18: #{dgcnn_forward.12} parent=11 // pred_check_branch
        %170 = sbr.rel (%p168) target = $region20
      $region19: #{dgcnn_forward.12} parent=11 // pred_region
        _
      $region20: #{dgcnn_forward.12} parent=11 // pred_fallthru
        _
      // Predicated region
      $region21: #{dgcnn_forward.12} parent=11 // pred_check
        %p171 = pneg %p118
      $region22: #{dgcnn_forward.12} parent=11 // pred_check_branch
        %173 = sbr.rel (%p171) target = $region24
      $region23: #{dgcnn_forward.12} parent=11 // pred_region
        _
      $region24: #{dgcnn_forward.12} parent=11 // pred_fallthru
        _
    $region12: #{dgcnn_forward.12} parent=5 // pred_fallthru
      _
    %p174 = scmp.lt.s32.totalorder %s10, 4
    // Predicated region
    $region25: #{dgcnn_forward.12} parent=5 // pred_check
      %p175 = pneg %p174
    $region26: #{dgcnn_forward.12} parent=5 // pred_check_branch
      %177 = sbr.rel (%p175) target = $region28
    $region27: #{dgcnn_forward.12} parent=5 // pred_region
      // Predicated region
      $region29: #{dgcnn_forward.12} parent=27 // pred_check
        %p178 = pneg %p70
      $region30: #{dgcnn_forward.12} parent=27 // pred_check_branch
        %180 = sbr.rel (%p178) target = $region32
      $region31: #{dgcnn_forward.12} parent=27 // pred_region
        %s181 = smul.u32 4, %s17
        %p182 = scmp.lt.s32.totalorder %s18, 3
        %s183 = scalar_select %p182, %s18, 3
        %p184 = scmp.lt.s32.totalorder %s181, 3
        %s185 = scalar_select %p184, %s181, 3
        %s186 = smul.addr %s183, 4
        %s187 = sadd.s32 %s185, %s186
        %s188 = smul.addr %s187, 4
        %s189 = scalar_lea.vmem %s1, %s188
        %s190 = smul.u32 4, %s17
      $region32: #{dgcnn_forward.12} parent=27 // pred_fallthru
        _
    $region28: #{dgcnn_forward.12} parent=5 // pred_fallthru
      _
    %p191 = scmp.le.s32.totalorder 1, %s10
    %p192 = scmp.lt.s32.totalorder %s10, 5
    %p193 = pnand %p191, %p192
    %p194 = pneg %p193
    // Predicated region
    $region33: #{dgcnn_forward.12} parent=5 // pred_check
      _
    $region34: #{dgcnn_forward.12} parent=5 // pred_check_branch
      %196 = sbr.rel (%p193) target = $region36
    $region35: #{dgcnn_forward.12} parent=5 // pred_region
      %s197 = ssub.s32 %s10, 1
      %s198 = smul.u32 4, %s19
      %p199 = scmp.lt.s32.totalorder %s198, 3
      %s200 = scalar_select %p199, %s198, 3
      %s201 = smul.addr %s200, 4
      %s202 = scalar_lea.vmem %s0, %s201
      %p203 = pneg %p48
      %p204 = pneg %p45
      %s205 = smul.u32 4, %s19
      %p206 = scmp.lt.s32.totalorder %s20, 3
      %s207 = scalar_select %p206, %s20, 3
      %p208 = scmp.lt.s32.totalorder %s205, 3
      %s209 = scalar_select %p208, %s205, 3
      %s210 = smul.addr %s207, 4
      %s211 = sadd.s32 %s209, %s210
      %s212 = smul.addr %s211, 4
      %s213 = scalar_lea.vmem %s1, %s212
      %p214 = pneg %p76
      %p215 = pneg %p73
      %p216 = pneg %p97
      %p217 = pneg %p94
      %p218 = pneg %p118
      %p219 = pneg %p115
      %p220 = pneg %p144
      %p221 = pneg %p141
      %s222 = smul.u32 4, %s19
      %p223 = scmp.lt.s32.totalorder %s222, 3
      %s224 = scalar_select %p223, %s222, 3
      %s225 = smul.addr %s224, 4
      %s226 = scalar_lea.vmem %s4, %s225
      %s227 = smul.u32 4, %s19
      %p228 = scmp.lt.s32.totalorder %s227, 3
      %s229 = scalar_select %p228, %s227, 3
      %s230 = smul.addr %s229, 4
      %s231 = scalar_lea.vmem %s0, %s230
      %s232 = smul.u32 4, %s19
      %s233 = smul.u32 4, %s19
      %p234 = scmp.lt.s32.totalorder %s20, 3
      %s235 = scalar_select %p234, %s20, 3
      %p236 = scmp.lt.s32.totalorder %s233, 3
      %s237 = scalar_select %p236, %s233, 3
      %s238 = smul.addr %s235, 4
      %s239 = sadd.s32 %s237, %s238
      %s240 = smul.addr %s239, 4
      %s241 = scalar_lea.vmem %s1, %s240
      %s242 = smul.u32 4, %s19
      %s243 = smul.u32 4, %s19
      %p244 = scmp.lt.s32.totalorder %s243, 3
      %s245 = scalar_select %p244, %s243, 3
      %s246 = smul.addr %s245, 4
      %s247 = scalar_lea.vmem %s4, %s246
      %s248 = smul.u32 4, %s19
      %v249 = vld [vmem:[%s231] sm:$0xf]
      %v250 = vld [vmem:[%s231 + $0x4] sm:$0xf]
      %v251 = vld [vmem:[%s231 + $0x8] sm:$0xf]
      %v252 = vld [vmem:[%s231 + $0xc] sm:$0xf]
      %v253 = vunpack.c.l.bf16 %v249
      %v254 = vunpack.c.l.bf16 %v250
      %v255 = vunpack.c.l.bf16 %v251
      %v256 = vunpack.c.l.bf16 %v252
      %v257 = vld [vmem:[%s241] sm:$0xf]
      %v258 = vld [vmem:[%s241 + $0x4] sm:$0xf]
      %v259 = vld [vmem:[%s241 + $0x8] sm:$0xf]
      %v260 = vld [vmem:[%s241 + $0xc] sm:$0xf]
      %v261 = vunpack.c.l.bf16 %v257
      %v262 = vunpack.c.l.bf16 %v258
      %v263 = vunpack.c.l.bf16 %v259
      %v264 = vunpack.c.l.bf16 %v260
      %v265 = vadd.f32 %v253, %v261
      %v266 = vadd.f32 %v254, %v262
      %v267 = vadd.f32 %v255, %v263
      %v268 = vadd.f32 %v256, %v264
      %v269 = vld [vmem:[%s2] sm:$0x1]
      %v271 = vlaneseq
      %v272 = vshrl.u32 %v271, 7
      %v273 = vsub.s32 0, %v272
      %v274 = vrot.slane %v269, %v273
      %v276 = vmul.f32 %v265, %v274
      %v277 = vmul.f32 %v266, %v274
      %v278 = vmul.f32 %v267, %v274
      %v279 = vmul.f32 %v268, %v274
      %v280 = vld [vmem:[%s3] sm:$0x1]
      %v282 = vlaneseq
      %v283 = vshrl.u32 %v282, 7
      %v284 = vsub.s32 0, %v283
      %v285 = vrot.slane %v280, %v284
      %v287 = vadd.f32 %v276, %v285
      %v288 = vadd.f32 %v277, %v285
      %v289 = vadd.f32 %v278, %v285
      %v290 = vadd.f32 %v279, %v285
      %v291 = vmax.f32 %v287, 0.0
      %v292 = vmax.f32 %v288, 0.0
      %v293 = vmax.f32 %v289, 0.0
      %v294 = vmax.f32 %v290, 0.0
      %v295 = vpack.c.bf16 %v292, %v291
      %v296 = vpack.c.bf16 %v294, %v293
      %p297 = scmp.eq.s32.totalorder %s20, 0
      // Predicated region
      $region37: #{dgcnn_forward.12} parent=35 // pred_check
        %p298 = pneg %p297
      $region38: #{dgcnn_forward.12} parent=35 // pred_check_branch
        %300 = sbr.rel (%p298) target = $region40
      $region39: #{dgcnn_forward.12} parent=35 // pred_region
        %v303 = vunpack.c.l.b16 %v295
        %v304 = vunpack.c.h.b16 %v295
        %v305 = vunpack.c.l.b16 %v296
        %v306 = vunpack.c.h.b16 %v296
        %v307 = vpack.c.b16 %v303, %v303
        %v308 = vpack.c.b16 %v304, %v304
        %v309 = vpack.c.b16 %v305, %v305
        %v310 = vpack.c.b16 %v306, %v306
        %315 = vst [vmem:[%s247] sm:$0xf] %v307
        %316 = vst [vmem:[%s247 + $0x4] sm:$0xf] %v308
        %317 = vst [vmem:[%s247 + $0x8] sm:$0xf] %v309
        %318 = vst [vmem:[%s247 + $0xc] sm:$0xf] %v310
      $region40: #{dgcnn_forward.12} parent=35 // pred_fallthru
        _
      %p319 = scmp.gt.s32.totalorder %s20, 0
      // Predicated region
      $region41: #{dgcnn_forward.12} parent=35 // pred_check
        %p320 = pneg %p319
      $region42: #{dgcnn_forward.12} parent=35 // pred_check_branch
        %322 = sbr.rel (%p320) target = $region44
      $region43: #{dgcnn_forward.12} parent=35 // pred_region
        %v323 = vld [vmem:[%s247] sm:$0xf]
        %v324 = vld [vmem:[%s247 + $0x4] sm:$0xf]
        %v325 = vld [vmem:[%s247 + $0x8] sm:$0xf]
        %v326 = vld [vmem:[%s247 + $0xc] sm:$0xf]
        %v329 = vunpack.c.l.b16 %v295
        %v330 = vunpack.c.h.b16 %v295
        %v331 = vunpack.c.l.b16 %v296
        %v332 = vunpack.c.h.b16 %v296
        %v333 = vpack.c.b16 %v329, %v329
        %v334 = vpack.c.b16 %v330, %v330
        %v335 = vpack.c.b16 %v331, %v331
        %v336 = vpack.c.b16 %v332, %v332
        %v341 = vmax.bf16 %v323, %v333
        %v342 = vmax.bf16 %v324, %v334
        %v343 = vmax.bf16 %v325, %v335
        %v344 = vmax.bf16 %v326, %v336
        %345 = vst [vmem:[%s247] sm:$0xf] %v341
        %346 = vst [vmem:[%s247 + $0x4] sm:$0xf] %v342
        %347 = vst [vmem:[%s247 + $0x8] sm:$0xf] %v343
        %348 = vst [vmem:[%s247 + $0xc] sm:$0xf] %v344
      $region44: #{dgcnn_forward.12} parent=35 // pred_fallthru
        _
      %s349 = smul.u32 4, %s19
      %p350 = scmp.lt.s32.totalorder %s349, 3
      %s351 = scalar_select %p350, %s349, 3
      %s352 = smul.addr %s351, 4
      %s353 = scalar_lea.vmem %s4, %s352
      // Predicated region
      $region45: #{dgcnn_forward.12} parent=35 // pred_check
        %p354 = pneg %p141
      $region46: #{dgcnn_forward.12} parent=35 // pred_check_branch
        %356 = sbr.rel (%p354) target = $region48
      $region47: #{dgcnn_forward.12} parent=35 // pred_region
        %s357 = smul.u32 4, %s19
      $region48: #{dgcnn_forward.12} parent=35 // pred_fallthru
        _
      // Predicated region
      $region49: #{dgcnn_forward.12} parent=35 // pred_check
        %p358 = pneg %p141
      $region50: #{dgcnn_forward.12} parent=35 // pred_check_branch
        %360 = sbr.rel (%p358) target = $region52
      $region51: #{dgcnn_forward.12} parent=35 // pred_region
        %s361 = smul.u32 4, %s19
        %p362 = scmp.lt.s32.totalorder %s361, 3
        %s363 = scalar_select %p362, %s361, 3
        %s364 = smul.addr %s363, 4
        %s365 = scalar_lea.vmem %s4, %s364
      $region52: #{dgcnn_forward.12} parent=35 // pred_fallthru
        _
    $region36: #{dgcnn_forward.12} parent=5 // pred_fallthru
      _
    %p366 = scmp.le.s32.totalorder 2, %s10
    // Predicated region
    $region53: #{dgcnn_forward.12} parent=5 // pred_check
      %p367 = pneg %p366
    $region54: #{dgcnn_forward.12} parent=5 // pred_check_branch
      %369 = sbr.rel (%p367) target = $region56
    $region55: #{dgcnn_forward.12} parent=5 // pred_region
      %s370 = ssub.s32 %s10, 2
    $region56: #{dgcnn_forward.12} parent=5 // pred_fallthru
      _
  $region6: #{dgcnn_forward.12} parent=0 // loop_footer
    %s14 = sadd.s32 1, %s10
  $region7: #{dgcnn_forward.12} parent=0 // loop_footer_branch
    %9 = sbr.rel target = $region3
  $region8: #{dgcnn_forward.12} parent=0 // loop_exit
    _

// kernel: dgcnn_forward.13
$region0: #{dgcnn_forward.13}
  #allocation0 [shape = 'u32[]', space=smem, size = 0x4, offset = 0x4, fixed_abs, tag = 'smem constant byte address 0x4 - core index']
  #allocation1 [shape = 'u32[144,128]{1,0:T(1,128)}', space=vmem, size = 0x12000, scoped, tag = 'internal scratch']
  %s0 = inlined_call_operand.vmem [shape: bf16[32,16], index: 0, kind: input, shape index: {}]
  %s1 = inlined_call_operand.vmem [shape: bf16[16,128], index: 1, kind: input, shape index: {}]
  %s2 = inlined_call_operand.vmem [shape: bf16[16,128], index: 2, kind: input, shape index: {}]
  %s3 = inlined_call_operand.vmem [shape: bf16[32,128], index: 3, kind: output, shape index: {0}]
  %s4 = inlined_call_operand.vmem [shape: bf16[32,128], index: 4, kind: output, shape index: {1}]
  %5 = xla_tuple %s3, %s4
  %s6 = sld [smem:[#allocation0]]
  $region30: #{dgcnn_forward.13} parent=0
    _
  %s8 = ssub.s32 1, %s6
  %s9 = scalar_select 0, %s8, %s6
  // Predicated region
  $region2: #{dgcnn_forward.13} parent=0 // pred_check
    _
  $region3: #{dgcnn_forward.13} parent=0 // pred_check_branch
    %11 = sbr.rel (0) target = $region5
  $region4: #{dgcnn_forward.13} parent=0 // pred_region
    _
  $region5: #{dgcnn_forward.13} parent=0 // pred_fallthru
    _
  // Predicated region
  $region6: #{dgcnn_forward.13} parent=0 // pred_check
    _
  $region7: #{dgcnn_forward.13} parent=0 // pred_check_branch
    %13 = sbr.rel (0) target = $region9
  $region8: #{dgcnn_forward.13} parent=0 // pred_region
    _
  $region9: #{dgcnn_forward.13} parent=0 // pred_fallthru
    _
  // Predicated region
  $region10: #{dgcnn_forward.13} parent=0 // pred_check
    _
  $region11: #{dgcnn_forward.13} parent=0 // pred_check_branch
    %15 = sbr.rel (0) target = $region13
  $region12: #{dgcnn_forward.13} parent=0 // pred_region
    _
  $region13: #{dgcnn_forward.13} parent=0 // pred_fallthru
    _
  %v17 = vld [vmem:[%s0] sm:$0xf]
  %v18 = vld [vmem:[%s0 + $0x4] sm:$0xf]
  %v19 = vld [vmem:[%s0 + $0x8] sm:$0xf]
  %v20 = vld [vmem:[%s0 + $0xc] sm:$0xf]
  %v21 = vld [vmem:[%s1] sm:$0xf]
  %v22 = vld [vmem:[%s1 + $0x4] sm:$0xf]
  %v27 = vunpack.c.l.b16 %v17
  %v28 = vunpack.c.l.b16 %v18
  %v29 = vunpack.c.l.b16 %v19
  %v30 = vunpack.c.l.b16 %v20
  %v31 = vpack.c.b16 %v28, %v27
  %v32 = vpack.c.b16 %v30, %v29
  %v35 = vunpack.c.l.b16 %v21
  %v36 = vunpack.c.l.b16 %v22
  %v37 = vpack.c.b16 %v36, %v35
  %vm39 = vcmask 130048
  %v41 = vsel %vm39, %v31, 0
  %v44 = vsel %vm39, %v32, 0
  %46 = vmatprep.subr.bf16.mxu0 0
  %47 = vmatpush1.bf16.msra.mxu0 %v37
  %48 = vmatprep.subr.bf16.mxu0 0
  %49 = vmatpush1.bf16.msra.mxu0 0
  %50 = vmatprep.subr.bf16.mxu0 0
  %51 = vmatpush1.bf16.msra.mxu0 0
  %52 = vmatprep.subr.bf16.mxu0 0
  %53 = vmatpush1.bf16.msra.mxu0 0
  %54 = vmatprep.subr.bf16.mxu0 0
  %55 = vmatpush1.bf16.msra.mxu0 0
  %56 = vmatprep.subr.bf16.mxu0 0
  %57 = vmatpush1.bf16.msra.mxu0 0
  %58 = vmatprep.subr.bf16.mxu0 0
  %59 = vmatpush1.bf16.msra.mxu0 0
  %60 = vmatprep.subr.bf16.mxu0 0
  %61 = vmatpush1.bf16.msra.mxu0 0
  %62 = vmatprep.subr.bf16.mxu0 0
  %63 = vmatpush1.bf16.msra.mxu0 0
  %64 = vmatprep.subr.bf16.mxu0 0
  %65 = vmatpush1.bf16.msra.mxu0 0
  %66 = vmatprep.subr.bf16.mxu0 0
  %67 = vmatpush1.bf16.msra.mxu0 0
  %68 = vmatprep.subr.bf16.mxu0 0
  %69 = vmatpush1.bf16.msra.mxu0 0
  %70 = vmatprep.subr.bf16.mxu0 0
  %71 = vmatpush1.bf16.msra.mxu0 0
  %72 = vmatprep.subr.bf16.mxu0 0
  %73 = vmatpush1.bf16.msra.mxu0 0
  %74 = vmatprep.subr.bf16.mxu0 0
  %75 = vmatpush1.bf16.msra.mxu0 0
  %76 = vmatprep.subr.bf16.mxu0 0
  %77 = vmatpush1.bf16.msra.mxu0 0
  %78 = vmatprep.mubr.bf16.mxu0 0
  %79 = vmatmul.mubr.bf16.gmra.mrb[0].mxu0 %v41
  %v80 = vpop.f32.mrb[0].mxu0
  %v81 = vadd.f32 0.0, %v80
  %v82 = vpop.f32.mrb[0].mxu0
  %v83 = vpop.f32.mrb[0].mxu0
  %v84 = vadd.f32 0.0, %v83
  %v85 = vpop.f32.mrb[0].mxu0
  %86 = vmatprep.mubr.bf16.mxu0 0
  %87 = vmatmul.mubr.bf16.gmra.mrb[0].mxu0 %v44
  %v88 = vpop.f32.mrb[0].mxu0
  %v89 = vadd.f32 0.0, %v88
  %v90 = vpop.f32.mrb[0].mxu0
  %v91 = vpop.f32.mrb[0].mxu0
  %v92 = vadd.f32 0.0, %v91
  %v93 = vpop.f32.mrb[0].mxu0
  %94 = vdwg.mxu0
  %v95 = vpack.c.bf16 %v84, %v81
  %v96 = vpack.c.bf16 %v92, %v89
  %v99 = vunpack.c.l.b16 %v95
  %v100 = vunpack.c.h.b16 %v95
  %v101 = vunpack.c.l.b16 %v96
  %v102 = vunpack.c.h.b16 %v96
  %v103 = vpack.c.b16 %v99, %v99
  %v104 = vpack.c.b16 %v100, %v100
  %v105 = vpack.c.b16 %v101, %v101
  %v106 = vpack.c.b16 %v102, %v102
  %111 = vst [vmem:[%s3] sm:$0xf] %v103
  %112 = vst [vmem:[%s3 + $0x4] sm:$0xf] %v104
  %113 = vst [vmem:[%s3 + $0x8] sm:$0xf] %v105
  %114 = vst [vmem:[%s3 + $0xc] sm:$0xf] %v106
  %v115 = vld [vmem:[%s2] sm:$0xf]
  %v116 = vld [vmem:[%s2 + $0x4] sm:$0xf]
  %v119 = vunpack.c.l.b16 %v115
  %v120 = vunpack.c.l.b16 %v116
  %v121 = vpack.c.b16 %v120, %v119
  %123 = vmatprep.subr.bf16.mxu0 0
  %124 = vmatpush1.bf16.msra.mxu0 %v121
  %125 = vmatprep.subr.bf16.mxu0 0
  %126 = vmatpush1.bf16.msra.mxu0 0
  %127 = vmatprep.subr.bf16.mxu0 0
  %128 = vmatpush1.bf16.msra.mxu0 0
  %129 = vmatprep.subr.bf16.mxu0 0
  %130 = vmatpush1.bf16.msra.mxu0 0
  %131 = vmatprep.subr.bf16.mxu0 0
  %132 = vmatpush1.bf16.msra.mxu0 0
  %133 = vmatprep.subr.bf16.mxu0 0
  %134 = vmatpush1.bf16.msra.mxu0 0
  %135 = vmatprep.subr.bf16.mxu0 0
  %136 = vmatpush1.bf16.msra.mxu0 0
  %137 = vmatprep.subr.bf16.mxu0 0
  %138 = vmatpush1.bf16.msra.mxu0 0
  %139 = vmatprep.subr.bf16.mxu0 0
  %140 = vmatpush1.bf16.msra.mxu0 0
  %141 = vmatprep.subr.bf16.mxu0 0
  %142 = vmatpush1.bf16.msra.mxu0 0
  %143 = vmatprep.subr.bf16.mxu0 0
  %144 = vmatpush1.bf16.msra.mxu0 0
  %145 = vmatprep.subr.bf16.mxu0 0
  %146 = vmatpush1.bf16.msra.mxu0 0
  %147 = vmatprep.subr.bf16.mxu0 0
  %148 = vmatpush1.bf16.msra.mxu0 0
  %149 = vmatprep.subr.bf16.mxu0 0
  %150 = vmatpush1.bf16.msra.mxu0 0
  %151 = vmatprep.subr.bf16.mxu0 0
  %152 = vmatpush1.bf16.msra.mxu0 0
  %153 = vmatprep.subr.bf16.mxu0 0
  %154 = vmatpush1.bf16.msra.mxu0 0
  %155 = vmatprep.mubr.bf16.mxu0 0
  %156 = vmatmul.mubr.bf16.gmra.mrb[0].mxu0 %v41
  %v157 = vpop.f32.mrb[0].mxu0
  %v158 = vadd.f32 0.0, %v157
  %v159 = vpop.f32.mrb[0].mxu0
  %v160 = vpop.f32.mrb[0].mxu0
  %v161 = vadd.f32 0.0, %v160
  %v162 = vpop.f32.mrb[0].mxu0
  %163 = vmatprep.mubr.bf16.mxu0 0
  %164 = vmatmul.mubr.bf16.gmra.mrb[0].mxu0 %v44
  %v165 = vpop.f32.mrb[0].mxu0
  %v166 = vadd.f32 0.0, %v165
  %v167 = vpop.f32.mrb[0].mxu0
  %v168 = vpop.f32.mrb[0].mxu0
  %v169 = vadd.f32 0.0, %v168
  %v170 = vpop.f32.mrb[0].mxu0
  %171 = vdwg.mxu0
  %v172 = vpack.c.bf16 %v161, %v158
  %v173 = vpack.c.bf16 %v169, %v166
  %v176 = vunpack.c.l.b16 %v172
  %v177 = vunpack.c.h.b16 %v172
  %v178 = vunpack.c.l.b16 %v173
  %v179 = vunpack.c.h.b16 %v173
  %v180 = vpack.c.b16 %v176, %v176
  %v181 = vpack.c.b16 %v177, %v177
  %v182 = vpack.c.b16 %v178, %v178
  %v183 = vpack.c.b16 %v179, %v179
  %188 = vst [vmem:[%s4] sm:$0xf] %v180
  %189 = vst [vmem:[%s4 + $0x4] sm:$0xf] %v181
  %190 = vst [vmem:[%s4 + $0x8] sm:$0xf] %v182
  %191 = vst [vmem:[%s4 + $0xc] sm:$0xf] %v183
  // Predicated region
  $region14: #{dgcnn_forward.13} parent=0 // pred_check
    _
  $region15: #{dgcnn_forward.13} parent=0 // pred_check_branch
    %193 = sbr.rel (0) target = $region17
  $region16: #{dgcnn_forward.13} parent=0 // pred_region
    _
  $region17: #{dgcnn_forward.13} parent=0 // pred_fallthru
    _
  // Predicated region
  $region18: #{dgcnn_forward.13} parent=0 // pred_check
    _
  $region19: #{dgcnn_forward.13} parent=0 // pred_check_branch
    %195 = sbr.rel (0) target = $region21
  $region20: #{dgcnn_forward.13} parent=0 // pred_region
    _
  $region21: #{dgcnn_forward.13} parent=0 // pred_fallthru
    _
  // Predicated region
  $region22: #{dgcnn_forward.13} parent=0 // pred_check
    _
  $region23: #{dgcnn_forward.13} parent=0 // pred_check_branch
    %197 = sbr.rel (0) target = $region25
  $region24: #{dgcnn_forward.13} parent=0 // pred_region
    _
  $region25: #{dgcnn_forward.13} parent=0 // pred_fallthru
    _
  // Predicated region
  $region26: #{dgcnn_forward.13} parent=0 // pred_check
    _
  $region27: #{dgcnn_forward.13} parent=0 // pred_check_branch
    %199 = sbr.rel (0) target = $region29
  $region28: #{dgcnn_forward.13} parent=0 // pred_region
    _
  $region29: #{dgcnn_forward.13} parent=0 // pred_fallthru
    _

// kernel: dgcnn_forward.17
$region0: #{dgcnn_forward.17}
  #allocation0 [shape = 'u32[]', space=smem, size = 0x4, offset = 0x4, fixed_abs, tag = 'smem constant byte address 0x4 - core index']
  #allocation1 [shape = 'u32[144,128]{1,0:T(1,128)}', space=vmem, size = 0x12000, scoped, tag = 'internal scratch']
  %s0 = inlined_call_operand.vmem [shape: bf16[32,128], index: 0, kind: input, shape index: {}]
  %s1 = inlined_call_operand.vmem [shape: f32[1,128], index: 1, kind: input, shape index: {}]
  %s2 = inlined_call_operand.vmem [shape: f32[1,128], index: 2, kind: input, shape index: {}]
  %s3 = inlined_call_operand.hbm [shape: f32[32,128], index: 3, kind: output, shape index: {}]
  %s4 = sld [smem:[#allocation0]]
  $region22: #{dgcnn_forward.17} parent=0
    _
  %s6 = ssub.s32 1, %s4
  %s7 = scalar_select 0, %s6, %s4
  $region1: #{dgcnn_forward.17} parent=0
    #allocation2 [shape = 'u8[16384]{0}', space=vmem, size = 0x4000, scoped, tag = 'output window, operand 0, single buffered']
    #allocation3 [shape = 's32[1]{0}', space=sflag, size = 0x4, scoped, tag = 'scoped memory for dgcnn_forward.17']
    %8 = vsyncpa [#allocation3], 0
    // Predicated region
    $region2: #{dgcnn_forward.17} parent=1 // pred_check
      _
    $region3: #{dgcnn_forward.17} parent=1 // pred_check_branch
      %10 = sbr.rel (0) target = $region5
    $region4: #{dgcnn_forward.17} parent=1 // pred_region
      _
    $region5: #{dgcnn_forward.17} parent=1 // pred_fallthru
      _
    // Predicated region
    $region6: #{dgcnn_forward.17} parent=1 // pred_check
      _
    $region7: #{dgcnn_forward.17} parent=1 // pred_check_branch
      %12 = sbr.rel (0) target = $region9
    $region8: #{dgcnn_forward.17} parent=1 // pred_region
      _
    $region9: #{dgcnn_forward.17} parent=1 // pred_fallthru
      _
    // Predicated region
    $region10: #{dgcnn_forward.17} parent=1 // pred_check
      _
    $region11: #{dgcnn_forward.17} parent=1 // pred_check_branch
      %14 = sbr.rel (0) target = $region13
    $region12: #{dgcnn_forward.17} parent=1 // pred_region
      _
    $region13: #{dgcnn_forward.17} parent=1 // pred_fallthru
      _
    %v15 = vld [vmem:[%s0] sm:$0xf]
    %v16 = vld [vmem:[%s0 + $0x4] sm:$0xf]
    %v17 = vld [vmem:[%s0 + $0x8] sm:$0xf]
    %v18 = vld [vmem:[%s0 + $0xc] sm:$0xf]
    %v19 = vunpack.c.l.bf16 %v15
    %v20 = vunpack.c.l.bf16 %v16
    %v21 = vunpack.c.l.bf16 %v17
    %v22 = vunpack.c.l.bf16 %v18
    %v23 = vld [vmem:[%s1] sm:$0x1]
    %v25 = vlaneseq
    %v26 = vshrl.u32 %v25, 7
    %v27 = vsub.s32 0, %v26
    %v28 = vrot.slane %v23, %v27
    %v30 = vmul.f32 %v19, %v28
    %v31 = vmul.f32 %v20, %v28
    %v32 = vmul.f32 %v21, %v28
    %v33 = vmul.f32 %v22, %v28
    %v34 = vld [vmem:[%s2] sm:$0x1]
    %v36 = vlaneseq
    %v37 = vshrl.u32 %v36, 7
    %v38 = vsub.s32 0, %v37
    %v39 = vrot.slane %v34, %v38
    %v41 = vadd.f32 %v30, %v39
    %v42 = vadd.f32 %v31, %v39
    %v43 = vadd.f32 %v32, %v39
    %v44 = vadd.f32 %v33, %v39
    %v45 = vmax.f32 %v41, 0.0
    %v46 = vmax.f32 %v42, 0.0
    %v47 = vmax.f32 %v43, 0.0
    %v48 = vmax.f32 %v44, 0.0
    %49 = vst [vmem:[#allocation2] sm:$0xff] %v45
    %50 = vst [vmem:[#allocation2 + $0x8] sm:$0xff] %v46
    %51 = vst [vmem:[#allocation2 + $0x10] sm:$0xff] %v47
    %52 = vst [vmem:[#allocation2 + $0x18] sm:$0xff] %v48
    // Predicated region
    $region14: #{dgcnn_forward.17} parent=1 // pred_check
      _
    $region15: #{dgcnn_forward.17} parent=1 // pred_check_branch
      %54 = sbr.rel (0) target = $region17
    $region16: #{dgcnn_forward.17} parent=1 // pred_region
      %s56 = ssub.s32 512, 512
      %57 = vsyncadd [#allocation3], %s56
      %s58 = sshll.u32 [#allocation2], 4
      %s59 = int_to_ptr.vmem [resolvable:$true] %s58
      %64 = dma.vmem_to_hbm [thread:$0]  %s59, 512, %s3, [#allocation3], 128, 128, 8
    $region17: #{dgcnn_forward.17} parent=1 // pred_fallthru
      _
    // Predicated region
    $region18: #{dgcnn_forward.17} parent=1 // pred_check
      _
    $region19: #{dgcnn_forward.17} parent=1 // pred_check_branch
      %66 = sbr.rel (0) target = $region21
    $region20: #{dgcnn_forward.17} parent=1 // pred_region
      %67 = dma.done [#allocation3], 512
    $region21: #{dgcnn_forward.17} parent=1 // pred_fallthru
      _
    %68 = vsyncpa [#allocation3], 1

// kernel: dgcnn_forward.16
$region0: #{dgcnn_forward.16}
  #allocation0 [shape = 'u32[]', space=smem, size = 0x4, offset = 0x4, fixed_abs, tag = 'smem constant byte address 0x4 - core index']
  #allocation1 [shape = 'u32[144,128]{1,0:T(1,128)}', space=vmem, size = 0x12000, scoped, tag = 'internal scratch']
  %s0 = inlined_call_operand.vmem [shape: bf16[32,48], index: 0, kind: input, shape index: {}]
  %s1 = inlined_call_operand.vmem [shape: bf16[48,128], index: 1, kind: input, shape index: {}]
  %s2 = inlined_call_operand.vmem [shape: bf16[32,128], index: 2, kind: output, shape index: {0}]
  %s3 = inlined_call_operand.vmem [shape: f32[1,8,128], index: 3, kind: output, shape index: {1}]
  %s4 = inlined_call_operand.vmem [shape: f32[1,8,128], index: 4, kind: output, shape index: {2}]
  %5 = xla_tuple %s2, %s3, %s4
  %s6 = sld [smem:[#allocation0]]
  $region34: #{dgcnn_forward.16} parent=0
    _
  %s8 = ssub.s32 1, %s6
  %s9 = scalar_select 0, %s8, %s6
  // Predicated region
  $region2: #{dgcnn_forward.16} parent=0 // pred_check
    _
  $region3: #{dgcnn_forward.16} parent=0 // pred_check_branch
    %11 = sbr.rel (0) target = $region5
  $region4: #{dgcnn_forward.16} parent=0 // pred_region
    _
  $region5: #{dgcnn_forward.16} parent=0 // pred_fallthru
    _
  // Predicated region
  $region6: #{dgcnn_forward.16} parent=0 // pred_check
    _
  $region7: #{dgcnn_forward.16} parent=0 // pred_check_branch
    %13 = sbr.rel (0) target = $region9
  $region8: #{dgcnn_forward.16} parent=0 // pred_region
    _
  $region9: #{dgcnn_forward.16} parent=0 // pred_fallthru
    _
  %v15 = vld [vmem:[%s0] sm:$0xf]
  %v16 = vld [vmem:[%s0 + $0x4] sm:$0xf]
  %v17 = vld [vmem:[%s0 + $0x8] sm:$0xf]
  %v18 = vld [vmem:[%s0 + $0xc] sm:$0xf]
  %v19 = vld [vmem:[%s1] sm:$0xf]
  %v20 = vld [vmem:[%s1 + $0x4] sm:$0xf]
  %v21 = vld [vmem:[%s1 + $0x8] sm:$0xf]
  %v22 = vld [vmem:[%s1 + $0xc] sm:$0xf]
  %v23 = vld [vmem:[%s1 + $0x10] sm:$0xf]
  %v24 = vld [vmem:[%s1 + $0x14] sm:$0xf]
  %v29 = vunpack.c.l.b16 %v15
  %v30 = vunpack.c.l.b16 %v16
  %v31 = vunpack.c.l.b16 %v17
  %v32 = vunpack.c.l.b16 %v18
  %v33 = vpack.c.b16 %v30, %v29
  %v34 = vpack.c.b16 %v32, %v31
  %v41 = vunpack.c.l.b16 %v19
  %v42 = vunpack.c.l.b16 %v20
  %v43 = vunpack.c.l.b16 %v21
  %v44 = vunpack.c.l.b16 %v22
  %v45 = vunpack.c.l.b16 %v23
  %v46 = vunpack.c.l.b16 %v24
  %v47 = vpack.c.b16 %v42, %v41
  %v48 = vpack.c.b16 %v44, %v43
  %v49 = vpack.c.b16 %v46, %v45
  %vm53 = vcmask 392192
  %v55 = vsel %vm53, %v33, 0
  %v58 = vsel %vm53, %v34, 0
  %60 = vmatprep.subr.bf16.mxu0 0
  %61 = vmatpush1.bf16.msra.mxu0 %v47
  %62 = vmatprep.subr.bf16.mxu0 0
  %63 = vmatpush1.bf16.msra.mxu0 %v48
  %64 = vmatprep.subr.bf16.mxu0 0
  %65 = vmatpush1.bf16.msra.mxu0 %v49
  %66 = vmatprep.subr.bf16.mxu0 0
  %67 = vmatpush1.bf16.msra.mxu0 0
  %68 = vmatprep.subr.bf16.mxu0 0
  %69 = vmatpush1.bf16.msra.mxu0 0
  %70 = vmatprep.subr.bf16.mxu0 0
  %71 = vmatpush1.bf16.msra.mxu0 0
  %72 = vmatprep.subr.bf16.mxu0 0
  %73 = vmatpush1.bf16.msra.mxu0 0
  %74 = vmatprep.subr.bf16.mxu0 0
  %75 = vmatpush1.bf16.msra.mxu0 0
  %76 = vmatprep.subr.bf16.mxu0 0
  %77 = vmatpush1.bf16.msra.mxu0 0
  %78 = vmatprep.subr.bf16.mxu0 0
  %79 = vmatpush1.bf16.msra.mxu0 0
  %80 = vmatprep.subr.bf16.mxu0 0
  %81 = vmatpush1.bf16.msra.mxu0 0
  %82 = vmatprep.subr.bf16.mxu0 0
  %83 = vmatpush1.bf16.msra.mxu0 0
  %84 = vmatprep.subr.bf16.mxu0 0
  %85 = vmatpush1.bf16.msra.mxu0 0
  %86 = vmatprep.subr.bf16.mxu0 0
  %87 = vmatpush1.bf16.msra.mxu0 0
  %88 = vmatprep.subr.bf16.mxu0 0
  %89 = vmatpush1.bf16.msra.mxu0 0
  %90 = vmatprep.subr.bf16.mxu0 0
  %91 = vmatpush1.bf16.msra.mxu0 0
  %92 = vmatprep.mubr.bf16.mxu0 0
  %93 = vmatmul.mubr.bf16.gmra.mrb[0].mxu0 %v55
  %v94 = vpop.f32.mrb[0].mxu0
  %v95 = vadd.f32 0.0, %v94
  %v96 = vpop.f32.mrb[0].mxu0
  %v97 = vpop.f32.mrb[0].mxu0
  %v98 = vadd.f32 0.0, %v97
  %v99 = vpop.f32.mrb[0].mxu0
  %100 = vmatprep.mubr.bf16.mxu0 0
  %101 = vmatmul.mubr.bf16.gmra.mrb[0].mxu0 %v58
  %v102 = vpop.f32.mrb[0].mxu0
  %v103 = vadd.f32 0.0, %v102
  %v104 = vpop.f32.mrb[0].mxu0
  %v105 = vpop.f32.mrb[0].mxu0
  %v106 = vadd.f32 0.0, %v105
  %v107 = vpop.f32.mrb[0].mxu0
  %108 = vdwg.mxu0
  %v109 = vpack.c.bf16 %v98, %v95
  %v110 = vpack.c.bf16 %v106, %v103
  %v113 = vunpack.c.l.b16 %v109
  %v114 = vunpack.c.h.b16 %v109
  %v115 = vunpack.c.l.b16 %v110
  %v116 = vunpack.c.h.b16 %v110
  %v117 = vpack.c.b16 %v113, %v113
  %v118 = vpack.c.b16 %v114, %v114
  %v119 = vpack.c.b16 %v115, %v115
  %v120 = vpack.c.b16 %v116, %v116
  %125 = vst [vmem:[%s2] sm:$0xf] %v117
  %126 = vst [vmem:[%s2 + $0x4] sm:$0xf] %v118
  %127 = vst [vmem:[%s2 + $0x8] sm:$0xf] %v119
  %128 = vst [vmem:[%s2 + $0xc] sm:$0xf] %v120
  %v129 = vadd.f32 %v95, %v98
  %v130 = vadd.f32 %v129, %v103
  %v131 = vadd.f32 %v130, %v106
  %v132 = vrot.slane %v131, 4
  %v133 = vadd.f32 %v131, %v132
  %v134 = vrot.slane %v133, 2
  %v135 = vadd.f32 %v133, %v134
  %v136 = vrot.slane %v135, 1
  %v137 = vadd.f32 %v135, %v136
  %v138 = vlaneseq
  %v139 = vshrl.u32 %v138, 7
  %vm140 = vcmp.eq.s32.totalorder %v139, 0
  %v141 = vsel %vm140, %v137, 0.0
  %142 = vst [vmem:[%s3] sm:$0xff] %v141
  %v143 = vmul.f32 %v95, %v95
  %v144 = vmul.f32 %v98, %v98
  %v145 = vmul.f32 %v103, %v103
  %v146 = vmul.f32 %v106, %v106
  %v147 = vadd.f32 %v143, %v144
  %v148 = vadd.f32 %v147, %v145
  %v149 = vadd.f32 %v148, %v146
  %v150 = vrot.slane %v149, 4
  %v151 = vadd.f32 %v149, %v150
  %v152 = vrot.slane %v151, 2
  %v153 = vadd.f32 %v151, %v152
  %v154 = vrot.slane %v153, 1
  %v155 = vadd.f32 %v153, %v154
  %v156 = vsel %vm140, %v155, 0.0
  %157 = vst [vmem:[%s4] sm:$0xff] %v156
  // Predicated region
  $region10: #{dgcnn_forward.16} parent=0 // pred_check
    _
  $region11: #{dgcnn_forward.16} parent=0 // pred_check_branch
    %159 = sbr.rel (0) target = $region13
  $region12: #{dgcnn_forward.16} parent=0 // pred_region
    _
  $region13: #{dgcnn_forward.16} parent=0 // pred_fallthru
    _
  // Predicated region
  $region14: #{dgcnn_forward.16} parent=0 // pred_check
    _
  $region15: #{dgcnn_forward.16} parent=0 // pred_check_branch
    %161 = sbr.rel (0) target = $region17
  $region16: #{dgcnn_forward.16} parent=0 // pred_region
    _
  $region17: #{dgcnn_forward.16} parent=0 // pred_fallthru
    _
  // Predicated region
  $region18: #{dgcnn_forward.16} parent=0 // pred_check
    _
  $region19: #{dgcnn_forward.16} parent=0 // pred_check_branch
    %163 = sbr.rel (0) target = $region21
  $region20: #{dgcnn_forward.16} parent=0 // pred_region
    _
  $region21: #{dgcnn_forward.16} parent=0 // pred_fallthru
    _
  // Predicated region
  $region22: #{dgcnn_forward.16} parent=0 // pred_check
    _
  $region23: #{dgcnn_forward.16} parent=0 // pred_check_branch
    %165 = sbr.rel (0) target = $region25
  $region24: #{dgcnn_forward.16} parent=0 // pred_region
    _
  $region25: #{dgcnn_forward.16} parent=0 // pred_fallthru
    _
  // Predicated region
  $region26: #{dgcnn_forward.16} parent=0 // pred_check
    _
  $region27: #{dgcnn_forward.16} parent=0 // pred_check_branch
    %167 = sbr.rel (0) target = $region29
  $region28: #{dgcnn_forward.16} parent=0 // pred_region
    _
  $region29: #{dgcnn_forward.16} parent=0 // pred_fallthru
    _
  // Predicated region
  $region30: #{dgcnn_forward.16} parent=0 // pred_check
    _
  $region31: #{dgcnn_forward.16} parent=0 // pred_check_branch
    %169 = sbr.rel (0) target = $region33
  $region32: #{dgcnn_forward.16} parent=0 // pred_region
    _
  $region33: #{dgcnn_forward.16} parent=0 // pred_fallthru
    _

</llo_original>
